<compile_context>
chip_gen: v6e
topology: v6e:2x2x1
jax: 0.10.0
libtpu: 0.0.40
codegen_flags: <defaults>
</compile_context>

<pallas_src>
import functools

import jax
import jax.numpy as jnp
from jax.experimental import pallas as pl
from jax.experimental.pallas import tpu as pltpu

LANE = 128  # TPU lane width; all kernel outputs are padded to this


def _round_up(x, m):
    return (x + m - 1) // m * m


def _pad_cols(a, n_pad):
    n = a.shape[-1]
    if n == n_pad:
        return a
    return jnp.pad(a, [(0, 0)] * (a.ndim - 1) + [(0, n_pad - n)])


def _conv_out(h, k, s):
    return (h - k) // s + 1


# ----------------------------- Pallas kernels -----------------------------


def _conv_mm_kernel(p_ref, w_ref, b_ref, o_ref):
    # patches (TM, K) bf16 @ weights (K, N) bf16 -> f32 acc, +bias, ReLU.
    acc = jnp.dot(p_ref[...], w_ref[...], preferred_element_type=jnp.float32)
    acc = acc + b_ref[...]
    o_ref[...] = jnp.maximum(acc, 0.0).astype(o_ref.dtype)


def conv_mm(patches, w, b, *, tm=512, out_dtype=jnp.bfloat16):
    """patches (M, K), w (K, N_pad) bf16, b (1, N_pad) f32 -> (M, N_pad)."""
    M, K = patches.shape
    Kw, N = w.shape
    assert Kw == K and N % LANE == 0

    tm_eff = min(tm, _round_up(M, 16))          # multiple of 16 (bf16 sublane pack)
    m_pad = _round_up(M, tm_eff)

    p = patches.astype(jnp.bfloat16)
    if m_pad != M:
        p = jnp.pad(p, ((0, m_pad - M), (0, 0)))

    out = pl.pallas_call(
        _conv_mm_kernel,
        out_shape=jax.ShapeDtypeStruct((m_pad, N), out_dtype),
        grid=(m_pad // tm_eff,),
        in_specs=[
            pl.BlockSpec((tm_eff, K), lambda i: (i, 0)),
            pl.BlockSpec((K, N), lambda i: (0, 0)),
            pl.BlockSpec((1, N), lambda i: (0, 0)),
        ],
        out_specs=pl.BlockSpec((tm_eff, N), lambda i: (i, 0)),
        compiler_params=pltpu.CompilerParams(
            dimension_semantics=("parallel",)),
        cost_estimate=pl.CostEstimate(
            flops=2 * m_pad * K * N,
            transcendentals=0,
            bytes_accessed=(m_pad * K * 2 + K * N * 2 + N * 4
                            + m_pad * N * jnp.dtype(out_dtype).itemsize)),
    )(p, w, b)
    return out[:M]


def _head_kernel(x_ref, w_ref, b_ref, g_ref, beta_ref, o_ref, *, n_real, eps):
    # Linear (bf16 x bf16 -> f32) + LayerNorm over the first n_real columns
    # of the 128-lane-padded feature dimension.
    h = jnp.dot(x_ref[...], w_ref[...], preferred_element_type=jnp.float32)
    h = h + b_ref[...]
    col = jax.lax.broadcasted_iota(jnp.int32, h.shape, 1)
    mask = (col < n_real).astype(jnp.float32)
    inv_n = jnp.float32(1.0 / n_real)
    mean = jnp.sum(h * mask, axis=-1, keepdims=True) * inv_n
    cent = (h - mean) * mask
    var = jnp.sum(cent * cent, axis=-1, keepdims=True) * inv_n
    hn = cent * jax.lax.rsqrt(var + eps)
    o_ref[...] = (hn * g_ref[...] + beta_ref[...]).astype(o_ref.dtype)


def head(x, w, b, gamma, beta, *, n_real, eps=1e-5, tm=512):
    M, K = x.shape
    Kw, N = w.shape
    assert Kw == K and N % LANE == 0

    tm_eff = min(tm, _round_up(M, 16))
    m_pad = _round_up(M, tm_eff)

    xb = x.astype(jnp.bfloat16)
    if m_pad != M:
        xb = jnp.pad(xb, ((0, m_pad - M), (0, 0)))

    kern = functools.partial(_head_kernel, n_real=n_real, eps=eps)
    out = pl.pallas_call(
        kern,
        out_shape=jax.ShapeDtypeStruct((m_pad, N), jnp.float32),
        grid=(m_pad // tm_eff,),
        in_specs=[
            pl.BlockSpec((tm_eff, K), lambda i: (i, 0)),
            pl.BlockSpec((K, N), lambda i: (0, 0)),
            pl.BlockSpec((1, N), lambda i: (0, 0)),
            pl.BlockSpec((1, N), lambda i: (0, 0)),
            pl.BlockSpec((1, N), lambda i: (0, 0)),
        ],
        out_specs=pl.BlockSpec((tm_eff, N), lambda i: (i, 0)),
        compiler_params=pltpu.CompilerParams(
            dimension_semantics=("parallel",)),
        cost_estimate=pl.CostEstimate(
            flops=2 * m_pad * K * N,
            transcendentals=m_pad,
            bytes_accessed=m_pad * K * 2 + K * N * 2 + 3 * N * 4 + m_pad * N * 4),
    )(xb, w, b, gamma, beta)
    return out[:M]


# ------------------------------- JAX glue ---------------------------------


def im2col(x, k, s):
    """x: (N, H, W, C) -> (N*OH*OW, k*k*C); patch element order = (kh, kw, c)."""
    n, h, w, c = x.shape
    oh = (h - k) // s + 1
    ow = (w - k) // s + 1
    cols = []
    for kh in range(k):
        for kw in range(k):
            cols.append(x[:, kh:kh + s * oh:s, kw:kw + s * ow:s, :])
    p = jnp.stack(cols, axis=3)                 # (N, OH, OW, k*k, C)
    return p.reshape(n * oh * ow, k * k * c), (n, oh, ow)


def init_params(key, in_channels, spatial, feature_dim):
    """Deterministic PyTorch-default-style init (kaiming-uniform-ish bounds)."""
    ks = jax.random.split(key, 8)

    def conv_params(kw_key, kb_key, kh, kw, cin, cout):
        fan_in = kh * kw * cin
        bound = 1.0 / float(fan_in) ** 0.5
        w = jax.random.uniform(kw_key, (kh, kw, cin, cout), jnp.float32,
                               -bound, bound).reshape(kh * kw * cin, cout)
        b = jax.random.uniform(kb_key, (1, cout), jnp.float32, -bound, bound)
        return w, b

    w1, b1 = conv_params(ks[0], ks[1], 8, 8, in_channels, 32)
    w2, b2 = conv_params(ks[2], ks[3], 4, 4, 32, 64)
    w3, b3 = conv_params(ks[4], ks[5], 3, 3, 64, 64)

    h = _conv_out(_conv_out(_conv_out(spatial, 8, 4), 4, 2), 3, 1)
    n_flatten = 64 * h * h

    bound = 1.0 / float(n_flatten) ** 0.5
    wl = jax.random.uniform(ks[6], (n_flatten, feature_dim), jnp.float32,
                            -bound, bound)
    bl = jax.random.uniform(ks[7], (1, feature_dim), jnp.float32, -bound, bound)
    gamma = jnp.ones((1, feature_dim), jnp.float32)   # LayerNorm default weight
    beta = jnp.zeros((1, feature_dim), jnp.float32)   # LayerNorm default bias

    return dict(w1=w1, b1=b1, w2=w2, b2=b2, w3=w3, b3=b3,
                wl=wl, bl=bl, gamma=gamma, beta=beta)


def prepare_params(raw, spatial):
    """One-time host-side prep: fold 1/255 into w1, permute wl rows so the head
    consumes the NHWC-flatten order, pad all output dims to 128 lanes, bf16 weights."""
    h1 = _conv_out(spatial, 8, 4)
    h2 = _conv_out(h1, 4, 2)
    h3 = _conv_out(h2, 3, 1)
    c3 = 64

    w1 = raw["w1"] / 255.0                      # (p/255)@w == p@(w/255)

    # wl rows are in PyTorch NCHW-flatten order (c, h, w); reorder to (h, w, c).
    orig = jnp.arange(c3 * h3 * h3).reshape(c3, h3, h3)
    perm = jnp.transpose(orig, (1, 2, 0)).reshape(-1)
    wl = raw["wl"][perm]

    def prep_w(w):
        return _pad_cols(w, _round_up(w.shape[1], LANE)).astype(jnp.bfloat16)

    def prep_v(v):
        return _pad_cols(v, _round_up(v.shape[1], LANE)).astype(jnp.float32)

    return dict(
        w1=prep_w(w1), b1=prep_v(raw["b1"]),
        w2=prep_w(raw["w2"]), b2=prep_v(raw["b2"]),
        w3=prep_w(raw["w3"]), b3=prep_v(raw["b3"]),
        wl=prep_w(wl), bl=prep_v(raw["bl"]),
        gamma=prep_v(raw["gamma"]), beta=prep_v(raw["beta"]),
    )


def random_encoder_forward(x_nchw, params, *, feature_dim):
    # PyTorch NCHW input -> NHWC bf16 for the kernels (0..255 exact in bf16).
    x = jnp.transpose(x_nchw, (0, 2, 3, 1)).astype(jnp.bfloat16)

    # conv1 + ReLU (1/255 folded into w1)
    p, (n, oh, ow) = im2col(x, 8, 4)
    x = conv_mm(p, params["w1"], params["b1"]).reshape(n, oh, ow, LANE)[..., :32]

    # conv2 + ReLU
    p, (n, oh, ow) = im2col(x, 4, 2)
    x = conv_mm(p, params["w2"], params["b2"]).reshape(n, oh, ow, LANE)[..., :64]

    # conv3 + ReLU
    p, (n, oh, ow) = im2col(x, 3, 1)
    x = conv_mm(p, params["w3"], params["b3"]).reshape(n, oh, ow, LANE)[..., :64]

    # NHWC flatten; wl rows were pre-permuted, so no runtime transpose needed.
    feat = x.reshape(n, -1)

    out = head(feat, params["wl"], params["bl"], params["gamma"],
               params["beta"], n_real=feature_dim)
    return out[:, :feature_dim]


# --------------------------------- main ------------------------------------

if __name__ == "__main__":
    key = jax.random.PRNGKey(0)
    k_x, k_p = jax.random.split(key)

    # Small, valid geometry: 36 -> 8 -> 3 -> 1 spatial, so n_flatten = 64.
    batch, channels, spatial, feature_dim = 2, 4, 36, 32

    # Pixel-like uint8 observation as a float tensor (PyTorch does x.float()).
    x = jax.random.randint(k_x, (batch, channels, spatial, spatial), 0, 256,
                           dtype=jnp.int32).astype(jnp.float32)

    raw = init_params(k_p, channels, spatial, feature_dim)
    params = prepare_params(raw, spatial)

    fwd = jax.jit(functools.partial(random_encoder_forward,
                                    feature_dim=feature_dim))
    out = fwd(x, params)
    out = jax.block_until_ready(out)

    assert out.shape == (batch, feature_dim), out.shape
    assert out.dtype == jnp.float32
    assert bool(jnp.all(jnp.isfinite(out)))
    print("KERNEL_OK")
</pallas_src>

<mosaic_0001>
module attributes {stable_mosaic.version = 11 : i64} {
  func.func @_conv_mm_kernel(%arg0: i32, %arg1: memref<128x256xbf16, #tpu.memory_space<vmem>>, %arg2: memref<256x128xbf16, #tpu.memory_space<vmem>>, %arg3: memref<1x128xf32, #tpu.memory_space<vmem>>, %arg4: memref<128x128xbf16, #tpu.memory_space<vmem>>) attributes {dimension_semantics = [#tpu.dimension_semantics<parallel>], iteration_bounds = array<i64: 1>, scalar_prefetch = 0 : i64, scratch_operands = 0 : i64, tpu.core_type = #tpu.core_type<tc>, window_params = [{transform_indices = @transform_0, window_bounds = array<i64: 128, 256>}, {pipeline_mode = #tpu.pipeline_mode<synchronous>, transform_indices = @transform_1, window_bounds = array<i64: 256, 128>}, {pipeline_mode = #tpu.pipeline_mode<synchronous>, transform_indices = @transform_2, window_bounds = array<i64: 1, 128>}, {transform_indices = @transform_3, window_bounds = array<i64: 128, 128>}]} {
    %c0 = arith.constant 0 : index
    %c0_0 = arith.constant 0 : index
    %0 = vector.load %arg1[%c0, %c0_0] : memref<128x256xbf16, #tpu.memory_space<vmem>>, vector<128x256xbf16>
    %c0_1 = arith.constant 0 : index
    %c0_2 = arith.constant 0 : index
    %1 = vector.load %arg2[%c0_1, %c0_2] : memref<256x128xbf16, #tpu.memory_space<vmem>>, vector<256x128xbf16>
    %cst = arith.constant dense<0.000000e+00> : vector<128x128xf32>
    %2 = tpu.matmul %0, %1, %cst {dimension_numbers = #tpu.dot_dimension_numbers<[1], [0], [0], [1], [0, 0, 1, 1], [], []>} : vector<128x256xbf16>, vector<256x128xbf16>, vector<128x128xf32> -> vector<128x128xf32>
    %c0_3 = arith.constant 0 : index
    %c0_4 = arith.constant 0 : index
    %3 = vector.load %arg3[%c0_3, %c0_4] : memref<1x128xf32, #tpu.memory_space<vmem>>, vector<1x128xf32>
    %4 = vector.broadcast %3 : vector<1x128xf32> to vector<128x128xf32>
    %5 = arith.addf %2, %4 : vector<128x128xf32>
    %cst_5 = arith.constant 0.000000e+00 : f32
    %6 = vector.broadcast %cst_5 : f32 to vector<128x128xf32>
    %7 = arith.maximumf %5, %6 : vector<128x128xf32>
    %8 = arith.truncf %7 : vector<128x128xf32> to vector<128x128xbf16>
    %c0_6 = arith.constant 0 : index
    %c0_7 = arith.constant 0 : index
    %9 = vector.load %arg4[%c0_6, %c0_7] : memref<128x128xbf16, #tpu.memory_space<vmem>>, vector<128x128xbf16>
    tpu.vector_store %arg4[%c0_6, %c0_7], %8 {strides = array<i32>} : memref<128x128xbf16, #tpu.memory_space<vmem>>, vector<128x128xbf16>,
    return
  }
  func.func @transform_0(%arg0: i32) -> (i32, i32) {
    %c0_i32 = arith.constant 0 : i32
    %c0_i32_0 = arith.constant 0 : i32
    return %arg0, %c0_i32 : i32, i32
  }
  func.func @transform_1(%arg0: i32) -> (i32, i32) {
    %c0_i32 = arith.constant 0 : i32
    %c0_i32_0 = arith.constant 0 : i32
    %c0_i32_1 = arith.constant 0 : i32
    return %c0_i32, %c0_i32_0 : i32, i32
  }
  func.func @transform_2(%arg0: i32) -> (i32, i32) {
    %c0_i32 = arith.constant 0 : i32
    %c0_i32_0 = arith.constant 0 : i32
    %c0_i32_1 = arith.constant 0 : i32
    return %c0_i32, %c0_i32_0 : i32, i32
  }
  func.func @transform_3(%arg0: i32) -> (i32, i32) {
    %c0_i32 = arith.constant 0 : i32
    %c0_i32_0 = arith.constant 0 : i32
    return %arg0, %c0_i32 : i32, i32
  }
}

module attributes {stable_mosaic.version = 11 : i64} {
  func.func @_conv_mm_kernel(%arg0: i32, %arg1: memref<32x512xbf16, #tpu.memory_space<vmem>>, %arg2: memref<512x128xbf16, #tpu.memory_space<vmem>>, %arg3: memref<1x128xf32, #tpu.memory_space<vmem>>, %arg4: memref<32x128xbf16, #tpu.memory_space<vmem>>) attributes {dimension_semantics = [#tpu.dimension_semantics<parallel>], iteration_bounds = array<i64: 1>, scalar_prefetch = 0 : i64, scratch_operands = 0 : i64, tpu.core_type = #tpu.core_type<tc>, window_params = [{transform_indices = @transform_0, window_bounds = array<i64: 32, 512>}, {pipeline_mode = #tpu.pipeline_mode<synchronous>, transform_indices = @transform_1, window_bounds = array<i64: 512, 128>}, {pipeline_mode = #tpu.pipeline_mode<synchronous>, transform_indices = @transform_2, window_bounds = array<i64: 1, 128>}, {transform_indices = @transform_3, window_bounds = array<i64: 32, 128>}]} {
    %c0 = arith.constant 0 : index
    %c0_0 = arith.constant 0 : index
    %0 = vector.load %arg1[%c0, %c0_0] : memref<32x512xbf16, #tpu.memory_space<vmem>>, vector<32x512xbf16>
    %c0_1 = arith.constant 0 : index
    %c0_2 = arith.constant 0 : index
    %1 = vector.load %arg2[%c0_1, %c0_2] : memref<512x128xbf16, #tpu.memory_space<vmem>>, vector<512x128xbf16>
    %cst = arith.constant dense<0.000000e+00> : vector<32x128xf32>
    %2 = tpu.matmul %0, %1, %cst {dimension_numbers = #tpu.dot_dimension_numbers<[1], [0], [0], [1], [0, 0, 1, 1], [], []>} : vector<32x512xbf16>, vector<512x128xbf16>, vector<32x128xf32> -> vector<32x128xf32>
    %c0_3 = arith.constant 0 : index
    %c0_4 = arith.constant 0 : index
    %3 = vector.load %arg3[%c0_3, %c0_4] : memref<1x128xf32, #tpu.memory_space<vmem>>, vector<1x128xf32>
    %4 = vector.broadcast %3 : vector<1x128xf32> to vector<32x128xf32>
    %5 = arith.addf %2, %4 : vector<32x128xf32>
    %cst_5 = arith.constant 0.000000e+00 : f32
    %6 = vector.broadcast %cst_5 : f32 to vector<32x128xf32>
    %7 = arith.maximumf %5, %6 : vector<32x128xf32>
    %8 = arith.truncf %7 : vector<32x128xf32> to vector<32x128xbf16>
    %c0_6 = arith.constant 0 : index
    %c0_7 = arith.constant 0 : index
    %9 = vector.load %arg4[%c0_6, %c0_7] : memref<32x128xbf16, #tpu.memory_space<vmem>>, vector<32x128xbf16>
    tpu.vector_store %arg4[%c0_6, %c0_7], %8 {strides = array<i32>} : memref<32x128xbf16, #tpu.memory_space<vmem>>, vector<32x128xbf16>,
    return
  }
  func.func @transform_0(%arg0: i32) -> (i32, i32) {
    %c0_i32 = arith.constant 0 : i32
    %c0_i32_0 = arith.constant 0 : i32
    return %arg0, %c0_i32 : i32, i32
  }
  func.func @transform_1(%arg0: i32) -> (i32, i32) {
    %c0_i32 = arith.constant 0 : i32
    %c0_i32_0 = arith.constant 0 : i32
    %c0_i32_1 = arith.constant 0 : i32
    return %c0_i32, %c0_i32_0 : i32, i32
  }
  func.func @transform_2(%arg0: i32) -> (i32, i32) {
    %c0_i32 = arith.constant 0 : i32
    %c0_i32_0 = arith.constant 0 : i32
    %c0_i32_1 = arith.constant 0 : i32
    return %c0_i32, %c0_i32_0 : i32, i32
  }
  func.func @transform_3(%arg0: i32) -> (i32, i32) {
    %c0_i32 = arith.constant 0 : i32
    %c0_i32_0 = arith.constant 0 : i32
    return %arg0, %c0_i32 : i32, i32
  }
}

module attributes {stable_mosaic.version = 11 : i64} {
  func.func @_conv_mm_kernel(%arg0: i32, %arg1: memref<16x576xbf16, #tpu.memory_space<vmem>>, %arg2: memref<576x128xbf16, #tpu.memory_space<vmem>>, %arg3: memref<1x128xf32, #tpu.memory_space<vmem>>, %arg4: memref<16x128xbf16, #tpu.memory_space<vmem>>) attributes {dimension_semantics = [#tpu.dimension_semantics<parallel>], iteration_bounds = array<i64: 1>, scalar_prefetch = 0 : i64, scratch_operands = 0 : i64, tpu.core_type = #tpu.core_type<tc>, window_params = [{transform_indices = @transform_0, window_bounds = array<i64: 16, 576>}, {pipeline_mode = #tpu.pipeline_mode<synchronous>, transform_indices = @transform_1, window_bounds = array<i64: 576, 128>}, {pipeline_mode = #tpu.pipeline_mode<synchronous>, transform_indices = @transform_2, window_bounds = array<i64: 1, 128>}, {transform_indices = @transform_3, window_bounds = array<i64: 16, 128>}]} {
    %c0 = arith.constant 0 : index
    %c0_0 = arith.constant 0 : index
    %0 = vector.load %arg1[%c0, %c0_0] : memref<16x576xbf16, #tpu.memory_space<vmem>>, vector<16x576xbf16>
    %c0_1 = arith.constant 0 : index
    %c0_2 = arith.constant 0 : index
    %1 = vector.load %arg2[%c0_1, %c0_2] : memref<576x128xbf16, #tpu.memory_space<vmem>>, vector<576x128xbf16>
    %cst = arith.constant dense<0.000000e+00> : vector<16x128xf32>
    %2 = tpu.matmul %0, %1, %cst {dimension_numbers = #tpu.dot_dimension_numbers<[1], [0], [0], [1], [0, 0, 1, 1], [], []>} : vector<16x576xbf16>, vector<576x128xbf16>, vector<16x128xf32> -> vector<16x128xf32>
    %c0_3 = arith.constant 0 : index
    %c0_4 = arith.constant 0 : index
    %3 = vector.load %arg3[%c0_3, %c0_4] : memref<1x128xf32, #tpu.memory_space<vmem>>, vector<1x128xf32>
    %4 = vector.broadcast %3 : vector<1x128xf32> to vector<16x128xf32>
    %5 = arith.addf %2, %4 : vector<16x128xf32>
    %cst_5 = arith.constant 0.000000e+00 : f32
    %6 = vector.broadcast %cst_5 : f32 to vector<16x128xf32>
    %7 = arith.maximumf %5, %6 : vector<16x128xf32>
    %8 = arith.truncf %7 : vector<16x128xf32> to vector<16x128xbf16>
    %c0_6 = arith.constant 0 : index
    %c0_7 = arith.constant 0 : index
    %9 = vector.load %arg4[%c0_6, %c0_7] : memref<16x128xbf16, #tpu.memory_space<vmem>>, vector<16x128xbf16>
    tpu.vector_store %arg4[%c0_6, %c0_7], %8 {strides = array<i32>} : memref<16x128xbf16, #tpu.memory_space<vmem>>, vector<16x128xbf16>,
    return
  }
  func.func @transform_0(%arg0: i32) -> (i32, i32) {
    %c0_i32 = arith.constant 0 : i32
    %c0_i32_0 = arith.constant 0 : i32
    return %arg0, %c0_i32 : i32, i32
  }
  func.func @transform_1(%arg0: i32) -> (i32, i32) {
    %c0_i32 = arith.constant 0 : i32
    %c0_i32_0 = arith.constant 0 : i32
    %c0_i32_1 = arith.constant 0 : i32
    return %c0_i32, %c0_i32_0 : i32, i32
  }
  func.func @transform_2(%arg0: i32) -> (i32, i32) {
    %c0_i32 = arith.constant 0 : i32
    %c0_i32_0 = arith.constant 0 : i32
    %c0_i32_1 = arith.constant 0 : i32
    return %c0_i32, %c0_i32_0 : i32, i32
  }
  func.func @transform_3(%arg0: i32) -> (i32, i32) {
    %c0_i32 = arith.constant 0 : i32
    %c0_i32_0 = arith.constant 0 : i32
    return %arg0, %c0_i32 : i32, i32
  }
}

module attributes {stable_mosaic.version = 11 : i64} {
  func.func @_head_kernel(%arg0: i32, %arg1: memref<16x64xbf16, #tpu.memory_space<vmem>>, %arg2: memref<64x128xbf16, #tpu.memory_space<vmem>>, %arg3: memref<1x128xf32, #tpu.memory_space<vmem>>, %arg4: memref<1x128xf32, #tpu.memory_space<vmem>>, %arg5: memref<1x128xf32, #tpu.memory_space<vmem>>, %arg6: memref<16x128xf32, #tpu.memory_space<vmem>>) attributes {dimension_semantics = [#tpu.dimension_semantics<parallel>], iteration_bounds = array<i64: 1>, scalar_prefetch = 0 : i64, scratch_operands = 0 : i64, tpu.core_type = #tpu.core_type<tc>, window_params = [{transform_indices = @transform_0, window_bounds = array<i64: 16, 64>}, {pipeline_mode = #tpu.pipeline_mode<synchronous>, transform_indices = @transform_1, window_bounds = array<i64: 64, 128>}, {pipeline_mode = #tpu.pipeline_mode<synchronous>, transform_indices = @transform_2, window_bounds = array<i64: 1, 128>}, {pipeline_mode = #tpu.pipeline_mode<synchronous>, transform_indices = @transform_3, window_bounds = array<i64: 1, 128>}, {pipeline_mode = #tpu.pipeline_mode<synchronous>, transform_indices = @transform_4, window_bounds = array<i64: 1, 128>}, {transform_indices = @transform_5, window_bounds = array<i64: 16, 128>}]} {
    %c0 = arith.constant 0 : index
    %c0_0 = arith.constant 0 : index
    %0 = vector.load %arg1[%c0, %c0_0] : memref<16x64xbf16, #tpu.memory_space<vmem>>, vector<16x64xbf16>
    %c0_1 = arith.constant 0 : index
    %c0_2 = arith.constant 0 : index
    %1 = vector.load %arg2[%c0_1, %c0_2] : memref<64x128xbf16, #tpu.memory_space<vmem>>, vector<64x128xbf16>
    %cst = arith.constant dense<0.000000e+00> : vector<16x128xf32>
    %2 = tpu.matmul %0, %1, %cst {dimension_numbers = #tpu.dot_dimension_numbers<[1], [0], [0], [1], [0, 0, 1, 1], [], []>} : vector<16x64xbf16>, vector<64x128xbf16>, vector<16x128xf32> -> vector<16x128xf32>
    %c0_3 = arith.constant 0 : index
    %c0_4 = arith.constant 0 : index
    %3 = vector.load %arg3[%c0_3, %c0_4] : memref<1x128xf32, #tpu.memory_space<vmem>>, vector<1x128xf32>
    %4 = vector.broadcast %3 : vector<1x128xf32> to vector<16x128xf32>
    %5 = arith.addf %2, %4 : vector<16x128xf32>
    %6 = tpu.iota {dimensions = array<i32: 1>} : vector<16x128xi32>
    %c32_i32 = arith.constant 32 : i32
    %7 = vector.broadcast %c32_i32 : i32 to vector<16x128xi32>
    %8 = arith.cmpi slt, %6, %7 : vector<16x128xi32>
    %9 = arith.extui %8 : vector<16x128xi1> to vector<16x128xi32>
    %10 = arith.sitofp %9 : vector<16x128xi32> to vector<16x128xf32>
    %11 = arith.mulf %5, %10 : vector<16x128xf32>
    %cst_5 = arith.constant dense<0.000000e+00> : vector<16xf32>
    %12 = vector.multi_reduction <add>, %11, %cst_5 [1] : vector<16x128xf32> to vector<16xf32>
    %13 = vector.shape_cast %12 : vector<16xf32> to vector<16x1xf32>
    %cst_6 = arith.constant 3.125000e-02 : f32
    %14 = vector.broadcast %cst_6 : f32 to vector<16x1xf32>
    %15 = arith.mulf %13, %14 : vector<16x1xf32>
    %16 = vector.broadcast %15 : vector<16x1xf32> to vector<16x128xf32>
    %17 = arith.subf %5, %16 : vector<16x128xf32>
    %18 = arith.mulf %17, %10 : vector<16x128xf32>
    %19 = arith.mulf %18, %18 : vector<16x128xf32>
    %cst_7 = arith.constant dense<0.000000e+00> : vector<16xf32>
    %20 = vector.multi_reduction <add>, %19, %cst_7 [1] : vector<16x128xf32> to vector<16xf32>
    %21 = vector.shape_cast %20 : vector<16xf32> to vector<16x1xf32>
    %cst_8 = arith.constant 3.125000e-02 : f32
    %22 = vector.broadcast %cst_8 : f32 to vector<16x1xf32>
    %23 = arith.mulf %21, %22 : vector<16x1xf32>
    %cst_9 = arith.constant 9.99999974E-6 : f32
    %24 = vector.broadcast %cst_9 : f32 to vector<16x1xf32>
    %25 = arith.addf %23, %24 : vector<16x1xf32>
    %26 = math.rsqrt %25 : vector<16x1xf32>
    %27 = vector.broadcast %26 : vector<16x1xf32> to vector<16x128xf32>
    %28 = arith.mulf %18, %27 : vector<16x128xf32>
    %c0_10 = arith.constant 0 : index
    %c0_11 = arith.constant 0 : index
    %29 = vector.load %arg4[%c0_10, %c0_11] : memref<1x128xf32, #tpu.memory_space<vmem>>, vector<1x128xf32>
    %30 = vector.broadcast %29 : vector<1x128xf32> to vector<16x128xf32>
    %31 = arith.mulf %28, %30 : vector<16x128xf32>
    %c0_12 = arith.constant 0 : index
    %c0_13 = arith.constant 0 : index
    %32 = vector.load %arg5[%c0_12, %c0_13] : memref<1x128xf32, #tpu.memory_space<vmem>>, vector<1x128xf32>
    %33 = vector.broadcast %32 : vector<1x128xf32> to vector<16x128xf32>
    %34 = arith.addf %31, %33 : vector<16x128xf32>
    %c0_14 = arith.constant 0 : index
    %c0_15 = arith.constant 0 : index
    %35 = vector.load %arg6[%c0_14, %c0_15] : memref<16x128xf32, #tpu.memory_space<vmem>>, vector<16x128xf32>
    tpu.vector_store %arg6[%c0_14, %c0_15], %34 {strides = array<i32>} : memref<16x128xf32, #tpu.memory_space<vmem>>, vector<16x128xf32>,
    return
  }
  func.func @transform_0(%arg0: i32) -> (i32, i32) {
    %c0_i32 = arith.constant 0 : i32
    %c0_i32_0 = arith.constant 0 : i32
    return %arg0, %c0_i32 : i32, i32
  }
  func.func @transform_1(%arg0: i32) -> (i32, i32) {
    %c0_i32 = arith.constant 0 : i32
    %c0_i32_0 = arith.constant 0 : i32
    %c0_i32_1 = arith.constant 0 : i32
    return %c0_i32, %c0_i32_0 : i32, i32
  }
  func.func @transform_2(%arg0: i32) -> (i32, i32) {
    %c0_i32 = arith.constant 0 : i32
    %c0_i32_0 = arith.constant 0 : i32
    %c0_i32_1 = arith.constant 0 : i32
    return %c0_i32, %c0_i32_0 : i32, i32
  }
  func.func @transform_3(%arg0: i32) -> (i32, i32) {
    %c0_i32 = arith.constant 0 : i32
    %c0_i32_0 = arith.constant 0 : i32
    %c0_i32_1 = arith.constant 0 : i32
    return %c0_i32, %c0_i32_0 : i32, i32
  }
  func.func @transform_4(%arg0: i32) -> (i32, i32) {
    %c0_i32 = arith.constant 0 : i32
    %c0_i32_0 = arith.constant 0 : i32
    %c0_i32_1 = arith.constant 0 : i32
    return %c0_i32, %c0_i32_0 : i32, i32
  }
  func.func @transform_5(%arg0: i32) -> (i32, i32) {
    %c0_i32 = arith.constant 0 : i32
    %c0_i32_0 = arith.constant 0 : i32
    return %arg0, %c0_i32 : i32, i32
  }
}

</mosaic_0001>

<llo_original>
// kernel: random_encoder_forward.4
$region0: #{random_encoder_forward.4}
  #allocation0 [shape = 'u32[]', space=smem, size = 0x4, offset = 0x4, fixed_abs, tag = 'smem constant byte address 0x4 - core index']
  #allocation1 [shape = 'u32[144,128]{1,0:T(1,128)}', space=vmem, size = 0x12000, scoped, tag = 'internal scratch']
  %s0 = inlined_call_operand.vmem [shape: bf16[128,256], index: 0, kind: input, shape index: {}]
  %s1 = inlined_call_operand.vmem [shape: bf16[256,128], index: 1, kind: input, shape index: {}]
  %s2 = inlined_call_operand.vmem [shape: f32[1,128], index: 2, kind: input, shape index: {}]
  %s3 = inlined_call_operand.vmem [shape: bf16[128,128], index: 3, kind: output, shape index: {}]
  %s4 = sld [smem:[#allocation0]]
  $region22: #{random_encoder_forward.4} parent=0
    _
  %s6 = ssub.s32 1, %s4
  %s7 = scalar_select 0, %s6, %s4
  // Predicated region
  $region2: #{random_encoder_forward.4} parent=0 // pred_check
    _
  $region3: #{random_encoder_forward.4} parent=0 // pred_check_branch
    %9 = sbr.rel (0) target = $region5
  $region4: #{random_encoder_forward.4} parent=0 // pred_region
    _
  $region5: #{random_encoder_forward.4} parent=0 // pred_fallthru
    _
  // Predicated region
  $region6: #{random_encoder_forward.4} parent=0 // pred_check
    _
  $region7: #{random_encoder_forward.4} parent=0 // pred_check_branch
    %11 = sbr.rel (0) target = $region9
  $region8: #{random_encoder_forward.4} parent=0 // pred_region
    _
  $region9: #{random_encoder_forward.4} parent=0 // pred_fallthru
    _
  // Predicated region
  $region10: #{random_encoder_forward.4} parent=0 // pred_check
    _
  $region11: #{random_encoder_forward.4} parent=0 // pred_check_branch
    %13 = sbr.rel (0) target = $region13
  $region12: #{random_encoder_forward.4} parent=0 // pred_region
    _
  $region13: #{random_encoder_forward.4} parent=0 // pred_fallthru
    _
  %v15 = vld [vmem:[%s0] sm:$0xff]
  %v16 = vld [vmem:[%s0 + $0x8] sm:$0xff]
  %v17 = vld [vmem:[%s0 + $0x10] sm:$0xff]
  %v18 = vld [vmem:[%s0 + $0x18] sm:$0xff]
  %v19 = vld [vmem:[%s0 + $0x20] sm:$0xff]
  %v20 = vld [vmem:[%s0 + $0x28] sm:$0xff]
  %v21 = vld [vmem:[%s0 + $0x30] sm:$0xff]
  %v22 = vld [vmem:[%s0 + $0x38] sm:$0xff]
  %v23 = vld [vmem:[%s0 + $0x40] sm:$0xff]
  %v24 = vld [vmem:[%s0 + $0x48] sm:$0xff]
  %v25 = vld [vmem:[%s0 + $0x50] sm:$0xff]
  %v26 = vld [vmem:[%s0 + $0x58] sm:$0xff]
  %v27 = vld [vmem:[%s0 + $0x60] sm:$0xff]
  %v28 = vld [vmem:[%s0 + $0x68] sm:$0xff]
  %v29 = vld [vmem:[%s0 + $0x70] sm:$0xff]
  %v30 = vld [vmem:[%s0 + $0x78] sm:$0xff]
  %v31 = vld [vmem:[%s1] sm:$0xf]
  %v32 = vld [vmem:[%s1 + $0x4] sm:$0xf]
  %v33 = vld [vmem:[%s1 + $0x8] sm:$0xf]
  %v34 = vld [vmem:[%s1 + $0xc] sm:$0xf]
  %v35 = vld [vmem:[%s1 + $0x10] sm:$0xf]
  %v36 = vld [vmem:[%s1 + $0x14] sm:$0xf]
  %v37 = vld [vmem:[%s1 + $0x18] sm:$0xf]
  %v38 = vld [vmem:[%s1 + $0x1c] sm:$0xf]
  %v39 = vld [vmem:[%s1 + $0x20] sm:$0xf]
  %v40 = vld [vmem:[%s1 + $0x24] sm:$0xf]
  %v41 = vld [vmem:[%s1 + $0x28] sm:$0xf]
  %v42 = vld [vmem:[%s1 + $0x2c] sm:$0xf]
  %v43 = vld [vmem:[%s1 + $0x30] sm:$0xf]
  %v44 = vld [vmem:[%s1 + $0x34] sm:$0xf]
  %v45 = vld [vmem:[%s1 + $0x38] sm:$0xf]
  %v46 = vld [vmem:[%s1 + $0x3c] sm:$0xf]
  %v47 = vld [vmem:[%s1 + $0x40] sm:$0xf]
  %v48 = vld [vmem:[%s1 + $0x44] sm:$0xf]
  %v49 = vld [vmem:[%s1 + $0x48] sm:$0xf]
  %v50 = vld [vmem:[%s1 + $0x4c] sm:$0xf]
  %v51 = vld [vmem:[%s1 + $0x50] sm:$0xf]
  %v52 = vld [vmem:[%s1 + $0x54] sm:$0xf]
  %v53 = vld [vmem:[%s1 + $0x58] sm:$0xf]
  %v54 = vld [vmem:[%s1 + $0x5c] sm:$0xf]
  %v55 = vld [vmem:[%s1 + $0x60] sm:$0xf]
  %v56 = vld [vmem:[%s1 + $0x64] sm:$0xf]
  %v57 = vld [vmem:[%s1 + $0x68] sm:$0xf]
  %v58 = vld [vmem:[%s1 + $0x6c] sm:$0xf]
  %v59 = vld [vmem:[%s1 + $0x70] sm:$0xf]
  %v60 = vld [vmem:[%s1 + $0x74] sm:$0xf]
  %v61 = vld [vmem:[%s1 + $0x78] sm:$0xf]
  %v62 = vld [vmem:[%s1 + $0x7c] sm:$0xf]
  %v63 = vld [vmem:[%s2] sm:$0x1]
  %v65 = vlaneseq
  %v66 = vshrl.u32 %v65, 7
  %v67 = vsub.s32 0, %v66
  %v68 = vrot.slane %v63, %v67
  %v86 = vunpack.c.l.b16 %v15
  %v87 = vunpack.c.h.b16 %v15
  %v88 = vunpack.c.l.b16 %v16
  %v89 = vunpack.c.h.b16 %v16
  %v90 = vunpack.c.l.b16 %v17
  %v91 = vunpack.c.h.b16 %v17
  %v92 = vunpack.c.l.b16 %v18
  %v93 = vunpack.c.h.b16 %v18
  %v94 = vunpack.c.l.b16 %v19
  %v95 = vunpack.c.h.b16 %v19
  %v96 = vunpack.c.l.b16 %v20
  %v97 = vunpack.c.h.b16 %v20
  %v98 = vunpack.c.l.b16 %v21
  %v99 = vunpack.c.h.b16 %v21
  %v100 = vunpack.c.l.b16 %v22
  %v101 = vunpack.c.h.b16 %v22
  %v102 = vunpack.c.l.b16 %v23
  %v103 = vunpack.c.h.b16 %v23
  %v104 = vunpack.c.l.b16 %v24
  %v105 = vunpack.c.h.b16 %v24
  %v106 = vunpack.c.l.b16 %v25
  %v107 = vunpack.c.h.b16 %v25
  %v108 = vunpack.c.l.b16 %v26
  %v109 = vunpack.c.h.b16 %v26
  %v110 = vunpack.c.l.b16 %v27
  %v111 = vunpack.c.h.b16 %v27
  %v112 = vunpack.c.l.b16 %v28
  %v113 = vunpack.c.h.b16 %v28
  %v114 = vunpack.c.l.b16 %v29
  %v115 = vunpack.c.h.b16 %v29
  %v116 = vunpack.c.l.b16 %v30
  %v117 = vunpack.c.h.b16 %v30
  %v118 = vpack.c.b16 %v88, %v86
  %v119 = vpack.c.b16 %v89, %v87
  %v120 = vpack.c.b16 %v92, %v90
  %v121 = vpack.c.b16 %v93, %v91
  %v122 = vpack.c.b16 %v96, %v94
  %v123 = vpack.c.b16 %v97, %v95
  %v124 = vpack.c.b16 %v100, %v98
  %v125 = vpack.c.b16 %v101, %v99
  %v126 = vpack.c.b16 %v104, %v102
  %v127 = vpack.c.b16 %v105, %v103
  %v128 = vpack.c.b16 %v108, %v106
  %v129 = vpack.c.b16 %v109, %v107
  %v130 = vpack.c.b16 %v112, %v110
  %v131 = vpack.c.b16 %v113, %v111
  %v132 = vpack.c.b16 %v116, %v114
  %v133 = vpack.c.b16 %v117, %v115
  %v182 = vunpack.c.l.b16 %v31
  %v183 = vunpack.c.l.b16 %v32
  %v184 = vunpack.c.l.b16 %v33
  %v185 = vunpack.c.l.b16 %v34
  %v186 = vunpack.c.l.b16 %v35
  %v187 = vunpack.c.l.b16 %v36
  %v188 = vunpack.c.l.b16 %v37
  %v189 = vunpack.c.l.b16 %v38
  %v190 = vunpack.c.l.b16 %v39
  %v191 = vunpack.c.l.b16 %v40
  %v192 = vunpack.c.l.b16 %v41
  %v193 = vunpack.c.l.b16 %v42
  %v194 = vunpack.c.l.b16 %v43
  %v195 = vunpack.c.l.b16 %v44
  %v196 = vunpack.c.l.b16 %v45
  %v197 = vunpack.c.l.b16 %v46
  %v198 = vunpack.c.l.b16 %v47
  %v199 = vunpack.c.l.b16 %v48
  %v200 = vunpack.c.l.b16 %v49
  %v201 = vunpack.c.l.b16 %v50
  %v202 = vunpack.c.l.b16 %v51
  %v203 = vunpack.c.l.b16 %v52
  %v204 = vunpack.c.l.b16 %v53
  %v205 = vunpack.c.l.b16 %v54
  %v206 = vunpack.c.l.b16 %v55
  %v207 = vunpack.c.l.b16 %v56
  %v208 = vunpack.c.l.b16 %v57
  %v209 = vunpack.c.l.b16 %v58
  %v210 = vunpack.c.l.b16 %v59
  %v211 = vunpack.c.l.b16 %v60
  %v212 = vunpack.c.l.b16 %v61
  %v213 = vunpack.c.l.b16 %v62
  %v214 = vpack.c.b16 %v183, %v182
  %v215 = vpack.c.b16 %v185, %v184
  %v216 = vpack.c.b16 %v187, %v186
  %v217 = vpack.c.b16 %v189, %v188
  %v218 = vpack.c.b16 %v191, %v190
  %v219 = vpack.c.b16 %v193, %v192
  %v220 = vpack.c.b16 %v195, %v194
  %v221 = vpack.c.b16 %v197, %v196
  %v222 = vpack.c.b16 %v199, %v198
  %v223 = vpack.c.b16 %v201, %v200
  %v224 = vpack.c.b16 %v203, %v202
  %v225 = vpack.c.b16 %v205, %v204
  %v226 = vpack.c.b16 %v207, %v206
  %v227 = vpack.c.b16 %v209, %v208
  %v228 = vpack.c.b16 %v211, %v210
  %v229 = vpack.c.b16 %v213, %v212
  %246 = vmatprep.subr.bf16.mxu0 0
  %247 = vmatpush1.bf16.msra.mxu0 %v221
  %248 = vmatprep.subr.bf16.mxu0 0
  %249 = vmatpush1.bf16.msra.mxu0 %v220
  %250 = vmatprep.subr.bf16.mxu0 0
  %251 = vmatpush1.bf16.msra.mxu0 %v219
  %252 = vmatprep.subr.bf16.mxu0 0
  %253 = vmatpush1.bf16.msra.mxu0 %v218
  %254 = vmatprep.subr.bf16.mxu0 0
  %255 = vmatpush1.bf16.msra.mxu0 %v217
  %256 = vmatprep.subr.bf16.mxu0 0
  %257 = vmatpush1.bf16.msra.mxu0 %v216
  %258 = vmatprep.subr.bf16.mxu0 0
  %259 = vmatpush1.bf16.msra.mxu0 %v215
  %260 = vmatprep.subr.bf16.mxu0 0
  %261 = vmatpush1.bf16.msra.mxu0 %v214
  %262 = vmatprep.subr.bf16.mxu0 0
  %263 = vmatpush2.bf16.msra.mxu0 %v229
  %264 = vmatprep.subr.bf16.mxu0 0
  %265 = vmatpush2.bf16.msra.mxu0 %v228
  %266 = vmatprep.subr.bf16.mxu0 0
  %267 = vmatpush2.bf16.msra.mxu0 %v227
  %268 = vmatprep.subr.bf16.mxu0 0
  %269 = vmatpush2.bf16.msra.mxu0 %v226
  %270 = vmatprep.subr.bf16.mxu0 0
  %271 = vmatpush2.bf16.msra.mxu0 %v225
  %272 = vmatprep.subr.bf16.mxu0 0
  %273 = vmatpush2.bf16.msra.mxu0 %v224
  %274 = vmatprep.subr.bf16.mxu0 0
  %275 = vmatpush2.bf16.msra.mxu0 %v223
  %276 = vmatprep.subr.bf16.mxu0 0
  %277 = vmatpush2.bf16.msra.mxu0 %v222
  %278 = vmatprep.mubr.bf16.mxu0 %v119
  %279 = vmatmul.mubr.bf16.gmra.mxu0 %v118
  %v280 = vpop.f32.mrf.mxu0
  %v281 = vadd.f32 %v68, %v280
  %v282 = vpop.f32.mrf.mxu0
  %v283 = vpop.f32.mrf.mxu0
  %v284 = vadd.f32 %v68, %v283
  %v285 = vpop.f32.mrf.mxu0
  %286 = vmatprep.mubr.bf16.mxu0 %v121
  %287 = vmatmul.mubr.bf16.gmra.mxu0 %v120
  %v288 = vpop.f32.mrf.mxu0
  %v289 = vadd.f32 %v68, %v288
  %v290 = vpop.f32.mrf.mxu0
  %v291 = vpop.f32.mrf.mxu0
  %v292 = vadd.f32 %v68, %v291
  %v293 = vpop.f32.mrf.mxu0
  %294 = vmatprep.mubr.bf16.mxu0 %v123
  %295 = vmatmul.mubr.bf16.gmra.mxu0 %v122
  %v296 = vpop.f32.mrf.mxu0
  %v297 = vadd.f32 %v68, %v296
  %v298 = vpop.f32.mrf.mxu0
  %v299 = vpop.f32.mrf.mxu0
  %v300 = vadd.f32 %v68, %v299
  %v301 = vpop.f32.mrf.mxu0
  %302 = vmatprep.mubr.bf16.mxu0 %v125
  %303 = vmatmul.mubr.bf16.gmra.mxu0 %v124
  %v304 = vpop.f32.mrf.mxu0
  %v305 = vadd.f32 %v68, %v304
  %v306 = vpop.f32.mrf.mxu0
  %v307 = vpop.f32.mrf.mxu0
  %v308 = vadd.f32 %v68, %v307
  %v309 = vpop.f32.mrf.mxu0
  %310 = vmatprep.mubr.bf16.mxu0 %v127
  %311 = vmatmul.mubr.bf16.gmra.mxu0 %v126
  %v312 = vpop.f32.mrf.mxu0
  %v313 = vadd.f32 %v68, %v312
  %v314 = vpop.f32.mrf.mxu0
  %v315 = vpop.f32.mrf.mxu0
  %v316 = vadd.f32 %v68, %v315
  %v317 = vpop.f32.mrf.mxu0
  %318 = vmatprep.mubr.bf16.mxu0 %v129
  %319 = vmatmul.mubr.bf16.gmra.mxu0 %v128
  %v320 = vpop.f32.mrf.mxu0
  %v321 = vadd.f32 %v68, %v320
  %v322 = vpop.f32.mrf.mxu0
  %v323 = vpop.f32.mrf.mxu0
  %v324 = vadd.f32 %v68, %v323
  %v325 = vpop.f32.mrf.mxu0
  %326 = vmatprep.mubr.bf16.mxu0 %v131
  %327 = vmatmul.mubr.bf16.gmra.mxu0 %v130
  %v328 = vpop.f32.mrf.mxu0
  %v329 = vadd.f32 %v68, %v328
  %v330 = vpop.f32.mrf.mxu0
  %v331 = vpop.f32.mrf.mxu0
  %v332 = vadd.f32 %v68, %v331
  %v333 = vpop.f32.mrf.mxu0
  %334 = vmatprep.mubr.bf16.mxu0 %v133
  %335 = vmatmul.mubr.bf16.gmra.mxu0 %v132
  %v336 = vpop.f32.mrf.mxu0
  %v337 = vadd.f32 %v68, %v336
  %v338 = vpop.f32.mrf.mxu0
  %v339 = vpop.f32.mrf.mxu0
  %v340 = vadd.f32 %v68, %v339
  %v341 = vpop.f32.mrf.mxu0
  %342 = vdwg.mxu0
  %v343 = vmax.f32 %v281, 0.0
  %v344 = vmax.f32 %v284, 0.0
  %v345 = vmax.f32 %v289, 0.0
  %v346 = vmax.f32 %v292, 0.0
  %v347 = vmax.f32 %v297, 0.0
  %v348 = vmax.f32 %v300, 0.0
  %v349 = vmax.f32 %v305, 0.0
  %v350 = vmax.f32 %v308, 0.0
  %v351 = vmax.f32 %v313, 0.0
  %v352 = vmax.f32 %v316, 0.0
  %v353 = vmax.f32 %v321, 0.0
  %v354 = vmax.f32 %v324, 0.0
  %v355 = vmax.f32 %v329, 0.0
  %v356 = vmax.f32 %v332, 0.0
  %v357 = vmax.f32 %v337, 0.0
  %v358 = vmax.f32 %v340, 0.0
  %v359 = vpack.c.bf16 %v344, %v343
  %v360 = vpack.c.bf16 %v346, %v345
  %v361 = vpack.c.bf16 %v348, %v347
  %v362 = vpack.c.bf16 %v350, %v349
  %v363 = vpack.c.bf16 %v352, %v351
  %v364 = vpack.c.bf16 %v354, %v353
  %v365 = vpack.c.bf16 %v356, %v355
  %v366 = vpack.c.bf16 %v358, %v357
  %v375 = vunpack.c.l.b16 %v359
  %v376 = vunpack.c.h.b16 %v359
  %v377 = vunpack.c.l.b16 %v360
  %v378 = vunpack.c.h.b16 %v360
  %v379 = vunpack.c.l.b16 %v361
  %v380 = vunpack.c.h.b16 %v361
  %v381 = vunpack.c.l.b16 %v362
  %v382 = vunpack.c.h.b16 %v362
  %v383 = vunpack.c.l.b16 %v363
  %v384 = vunpack.c.h.b16 %v363
  %v385 = vunpack.c.l.b16 %v364
  %v386 = vunpack.c.h.b16 %v364
  %v387 = vunpack.c.l.b16 %v365
  %v388 = vunpack.c.h.b16 %v365
  %v389 = vunpack.c.l.b16 %v366
  %v390 = vunpack.c.h.b16 %v366
  %v391 = vpack.c.b16 %v375, %v375
  %v392 = vpack.c.b16 %v376, %v376
  %v393 = vpack.c.b16 %v377, %v377
  %v394 = vpack.c.b16 %v378, %v378
  %v395 = vpack.c.b16 %v379, %v379
  %v396 = vpack.c.b16 %v380, %v380
  %v397 = vpack.c.b16 %v381, %v381
  %v398 = vpack.c.b16 %v382, %v382
  %v399 = vpack.c.b16 %v383, %v383
  %v400 = vpack.c.b16 %v384, %v384
  %v401 = vpack.c.b16 %v385, %v385
  %v402 = vpack.c.b16 %v386, %v386
  %v403 = vpack.c.b16 %v387, %v387
  %v404 = vpack.c.b16 %v388, %v388
  %v405 = vpack.c.b16 %v389, %v389
  %v406 = vpack.c.b16 %v390, %v390
  %423 = vst [vmem:[%s3] sm:$0xf] %v391
  %424 = vst [vmem:[%s3 + $0x4] sm:$0xf] %v392
  %425 = vst [vmem:[%s3 + $0x8] sm:$0xf] %v393
  %426 = vst [vmem:[%s3 + $0xc] sm:$0xf] %v394
  %427 = vst [vmem:[%s3 + $0x10] sm:$0xf] %v395
  %428 = vst [vmem:[%s3 + $0x14] sm:$0xf] %v396
  %429 = vst [vmem:[%s3 + $0x18] sm:$0xf] %v397
  %430 = vst [vmem:[%s3 + $0x1c] sm:$0xf] %v398
  %431 = vst [vmem:[%s3 + $0x20] sm:$0xf] %v399
  %432 = vst [vmem:[%s3 + $0x24] sm:$0xf] %v400
  %433 = vst [vmem:[%s3 + $0x28] sm:$0xf] %v401
  %434 = vst [vmem:[%s3 + $0x2c] sm:$0xf] %v402
  %435 = vst [vmem:[%s3 + $0x30] sm:$0xf] %v403
  %436 = vst [vmem:[%s3 + $0x34] sm:$0xf] %v404
  %437 = vst [vmem:[%s3 + $0x38] sm:$0xf] %v405
  %438 = vst [vmem:[%s3 + $0x3c] sm:$0xf] %v406
  // Predicated region
  $region14: #{random_encoder_forward.4} parent=0 // pred_check
    _
  $region15: #{random_encoder_forward.4} parent=0 // pred_check_branch
    %440 = sbr.rel (0) target = $region17
  $region16: #{random_encoder_forward.4} parent=0 // pred_region
    _
  $region17: #{random_encoder_forward.4} parent=0 // pred_fallthru
    _
  // Predicated region
  $region18: #{random_encoder_forward.4} parent=0 // pred_check
    _
  $region19: #{random_encoder_forward.4} parent=0 // pred_check_branch
    %442 = sbr.rel (0) target = $region21
  $region20: #{random_encoder_forward.4} parent=0 // pred_region
    _
  $region21: #{random_encoder_forward.4} parent=0 // pred_fallthru
    _

// kernel: random_encoder_forward.5
$region0: #{random_encoder_forward.5}
  #allocation0 [shape = 'u32[]', space=smem, size = 0x4, offset = 0x4, fixed_abs, tag = 'smem constant byte address 0x4 - core index']
  #allocation1 [shape = 'u32[144,128]{1,0:T(1,128)}', space=vmem, size = 0x12000, scoped, tag = 'internal scratch']
  %s0 = inlined_call_operand.vmem [shape: bf16[32,512], index: 0, kind: input, shape index: {}]
  %s1 = inlined_call_operand.vmem [shape: bf16[512,128], index: 1, kind: input, shape index: {}]
  %s2 = inlined_call_operand.vmem [shape: f32[1,128], index: 2, kind: input, shape index: {}]
  %s3 = inlined_call_operand.vmem [shape: bf16[32,128], index: 3, kind: output, shape index: {}]
  %s4 = sld [smem:[#allocation0]]
  $region22: #{random_encoder_forward.5} parent=0
    _
  %s6 = ssub.s32 1, %s4
  %s7 = scalar_select 0, %s6, %s4
  // Predicated region
  $region2: #{random_encoder_forward.5} parent=0 // pred_check
    _
  $region3: #{random_encoder_forward.5} parent=0 // pred_check_branch
    %9 = sbr.rel (0) target = $region5
  $region4: #{random_encoder_forward.5} parent=0 // pred_region
    _
  $region5: #{random_encoder_forward.5} parent=0 // pred_fallthru
    _
  // Predicated region
  $region6: #{random_encoder_forward.5} parent=0 // pred_check
    _
  $region7: #{random_encoder_forward.5} parent=0 // pred_check_branch
    %11 = sbr.rel (0) target = $region9
  $region8: #{random_encoder_forward.5} parent=0 // pred_region
    _
  $region9: #{random_encoder_forward.5} parent=0 // pred_fallthru
    _
  // Predicated region
  $region10: #{random_encoder_forward.5} parent=0 // pred_check
    _
  $region11: #{random_encoder_forward.5} parent=0 // pred_check_branch
    %13 = sbr.rel (0) target = $region13
  $region12: #{random_encoder_forward.5} parent=0 // pred_region
    _
  $region13: #{random_encoder_forward.5} parent=0 // pred_fallthru
    _
  %v15 = vld [vmem:[%s0] sm:$0xff]
  %v16 = vld [vmem:[%s0 + $0x8] sm:$0xff]
  %v17 = vld [vmem:[%s0 + $0x10] sm:$0xff]
  %v18 = vld [vmem:[%s0 + $0x18] sm:$0xff]
  %v19 = vld [vmem:[%s0 + $0x20] sm:$0xff]
  %v20 = vld [vmem:[%s0 + $0x28] sm:$0xff]
  %v21 = vld [vmem:[%s0 + $0x30] sm:$0xff]
  %v22 = vld [vmem:[%s0 + $0x38] sm:$0xff]
  %v23 = vld [vmem:[%s1] sm:$0xf]
  %v24 = vld [vmem:[%s1 + $0x4] sm:$0xf]
  %v25 = vld [vmem:[%s1 + $0x8] sm:$0xf]
  %v26 = vld [vmem:[%s1 + $0xc] sm:$0xf]
  %v27 = vld [vmem:[%s1 + $0x10] sm:$0xf]
  %v28 = vld [vmem:[%s1 + $0x14] sm:$0xf]
  %v29 = vld [vmem:[%s1 + $0x18] sm:$0xf]
  %v30 = vld [vmem:[%s1 + $0x1c] sm:$0xf]
  %v31 = vld [vmem:[%s1 + $0x20] sm:$0xf]
  %v32 = vld [vmem:[%s1 + $0x24] sm:$0xf]
  %v33 = vld [vmem:[%s1 + $0x28] sm:$0xf]
  %v34 = vld [vmem:[%s1 + $0x2c] sm:$0xf]
  %v35 = vld [vmem:[%s1 + $0x30] sm:$0xf]
  %v36 = vld [vmem:[%s1 + $0x34] sm:$0xf]
  %v37 = vld [vmem:[%s1 + $0x38] sm:$0xf]
  %v38 = vld [vmem:[%s1 + $0x3c] sm:$0xf]
  %v39 = vld [vmem:[%s1 + $0x40] sm:$0xf]
  %v40 = vld [vmem:[%s1 + $0x44] sm:$0xf]
  %v41 = vld [vmem:[%s1 + $0x48] sm:$0xf]
  %v42 = vld [vmem:[%s1 + $0x4c] sm:$0xf]
  %v43 = vld [vmem:[%s1 + $0x50] sm:$0xf]
  %v44 = vld [vmem:[%s1 + $0x54] sm:$0xf]
  %v45 = vld [vmem:[%s1 + $0x58] sm:$0xf]
  %v46 = vld [vmem:[%s1 + $0x5c] sm:$0xf]
  %v47 = vld [vmem:[%s1 + $0x60] sm:$0xf]
  %v48 = vld [vmem:[%s1 + $0x64] sm:$0xf]
  %v49 = vld [vmem:[%s1 + $0x68] sm:$0xf]
  %v50 = vld [vmem:[%s1 + $0x6c] sm:$0xf]
  %v51 = vld [vmem:[%s1 + $0x70] sm:$0xf]
  %v52 = vld [vmem:[%s1 + $0x74] sm:$0xf]
  %v53 = vld [vmem:[%s1 + $0x78] sm:$0xf]
  %v54 = vld [vmem:[%s1 + $0x7c] sm:$0xf]
  %v55 = vld [vmem:[%s1 + $0x80] sm:$0xf]
  %v56 = vld [vmem:[%s1 + $0x84] sm:$0xf]
  %v57 = vld [vmem:[%s1 + $0x88] sm:$0xf]
  %v58 = vld [vmem:[%s1 + $0x8c] sm:$0xf]
  %v59 = vld [vmem:[%s1 + $0x90] sm:$0xf]
  %v60 = vld [vmem:[%s1 + $0x94] sm:$0xf]
  %v61 = vld [vmem:[%s1 + $0x98] sm:$0xf]
  %v62 = vld [vmem:[%s1 + $0x9c] sm:$0xf]
  %v63 = vld [vmem:[%s1 + $0xa0] sm:$0xf]
  %v64 = vld [vmem:[%s1 + $0xa4] sm:$0xf]
  %v65 = vld [vmem:[%s1 + $0xa8] sm:$0xf]
  %v66 = vld [vmem:[%s1 + $0xac] sm:$0xf]
  %v67 = vld [vmem:[%s1 + $0xb0] sm:$0xf]
  %v68 = vld [vmem:[%s1 + $0xb4] sm:$0xf]
  %v69 = vld [vmem:[%s1 + $0xb8] sm:$0xf]
  %v70 = vld [vmem:[%s1 + $0xbc] sm:$0xf]
  %v71 = vld [vmem:[%s1 + $0xc0] sm:$0xf]
  %v72 = vld [vmem:[%s1 + $0xc4] sm:$0xf]
  %v73 = vld [vmem:[%s1 + $0xc8] sm:$0xf]
  %v74 = vld [vmem:[%s1 + $0xcc] sm:$0xf]
  %v75 = vld [vmem:[%s1 + $0xd0] sm:$0xf]
  %v76 = vld [vmem:[%s1 + $0xd4] sm:$0xf]
  %v77 = vld [vmem:[%s1 + $0xd8] sm:$0xf]
  %v78 = vld [vmem:[%s1 + $0xdc] sm:$0xf]
  %v79 = vld [vmem:[%s1 + $0xe0] sm:$0xf]
  %v80 = vld [vmem:[%s1 + $0xe4] sm:$0xf]
  %v81 = vld [vmem:[%s1 + $0xe8] sm:$0xf]
  %v82 = vld [vmem:[%s1 + $0xec] sm:$0xf]
  %v83 = vld [vmem:[%s1 + $0xf0] sm:$0xf]
  %v84 = vld [vmem:[%s1 + $0xf4] sm:$0xf]
  %v85 = vld [vmem:[%s1 + $0xf8] sm:$0xf]
  %v86 = vld [vmem:[%s1 + $0xfc] sm:$0xf]
  %v87 = vld [vmem:[%s2] sm:$0x1]
  %v89 = vlaneseq
  %v90 = vshrl.u32 %v89, 7
  %v91 = vsub.s32 0, %v90
  %v92 = vrot.slane %v87, %v91
  %v102 = vunpack.c.l.b16 %v15
  %v103 = vunpack.c.h.b16 %v15
  %v104 = vunpack.c.l.b16 %v16
  %v105 = vunpack.c.h.b16 %v16
  %v106 = vunpack.c.l.b16 %v17
  %v107 = vunpack.c.h.b16 %v17
  %v108 = vunpack.c.l.b16 %v18
  %v109 = vunpack.c.h.b16 %v18
  %v110 = vunpack.c.l.b16 %v19
  %v111 = vunpack.c.h.b16 %v19
  %v112 = vunpack.c.l.b16 %v20
  %v113 = vunpack.c.h.b16 %v20
  %v114 = vunpack.c.l.b16 %v21
  %v115 = vunpack.c.h.b16 %v21
  %v116 = vunpack.c.l.b16 %v22
  %v117 = vunpack.c.h.b16 %v22
  %v118 = vpack.c.b16 %v106, %v102
  %v119 = vpack.c.b16 %v107, %v103
  %v120 = vpack.c.b16 %v108, %v104
  %v121 = vpack.c.b16 %v109, %v105
  %v122 = vpack.c.b16 %v114, %v110
  %v123 = vpack.c.b16 %v115, %v111
  %v124 = vpack.c.b16 %v116, %v112
  %v125 = vpack.c.b16 %v117, %v113
  %v198 = vunpack.c.l.b16 %v23
  %v199 = vunpack.c.l.b16 %v24
  %v200 = vunpack.c.l.b16 %v25
  %v201 = vunpack.c.l.b16 %v26
  %v202 = vunpack.c.l.b16 %v27
  %v203 = vunpack.c.l.b16 %v28
  %v204 = vunpack.c.l.b16 %v29
  %v205 = vunpack.c.l.b16 %v30
  %v206 = vunpack.c.l.b16 %v31
  %v207 = vunpack.c.l.b16 %v32
  %v208 = vunpack.c.l.b16 %v33
  %v209 = vunpack.c.l.b16 %v34
  %v210 = vunpack.c.l.b16 %v35
  %v211 = vunpack.c.l.b16 %v36
  %v212 = vunpack.c.l.b16 %v37
  %v213 = vunpack.c.l.b16 %v38
  %v214 = vunpack.c.l.b16 %v39
  %v215 = vunpack.c.l.b16 %v40
  %v216 = vunpack.c.l.b16 %v41
  %v217 = vunpack.c.l.b16 %v42
  %v218 = vunpack.c.l.b16 %v43
  %v219 = vunpack.c.l.b16 %v44
  %v220 = vunpack.c.l.b16 %v45
  %v221 = vunpack.c.l.b16 %v46
  %v222 = vunpack.c.l.b16 %v47
  %v223 = vunpack.c.l.b16 %v48
  %v224 = vunpack.c.l.b16 %v49
  %v225 = vunpack.c.l.b16 %v50
  %v226 = vunpack.c.l.b16 %v51
  %v227 = vunpack.c.l.b16 %v52
  %v228 = vunpack.c.l.b16 %v53
  %v229 = vunpack.c.l.b16 %v54
  %v230 = vunpack.c.l.b16 %v55
  %v231 = vunpack.c.l.b16 %v56
  %v232 = vunpack.c.l.b16 %v57
  %v233 = vunpack.c.l.b16 %v58
  %v234 = vunpack.c.l.b16 %v59
  %v235 = vunpack.c.l.b16 %v60
  %v236 = vunpack.c.l.b16 %v61
  %v237 = vunpack.c.l.b16 %v62
  %v238 = vunpack.c.l.b16 %v63
  %v239 = vunpack.c.l.b16 %v64
  %v240 = vunpack.c.l.b16 %v65
  %v241 = vunpack.c.l.b16 %v66
  %v242 = vunpack.c.l.b16 %v67
  %v243 = vunpack.c.l.b16 %v68
  %v244 = vunpack.c.l.b16 %v69
  %v245 = vunpack.c.l.b16 %v70
  %v246 = vunpack.c.l.b16 %v71
  %v247 = vunpack.c.l.b16 %v72
  %v248 = vunpack.c.l.b16 %v73
  %v249 = vunpack.c.l.b16 %v74
  %v250 = vunpack.c.l.b16 %v75
  %v251 = vunpack.c.l.b16 %v76
  %v252 = vunpack.c.l.b16 %v77
  %v253 = vunpack.c.l.b16 %v78
  %v254 = vunpack.c.l.b16 %v79
  %v255 = vunpack.c.l.b16 %v80
  %v256 = vunpack.c.l.b16 %v81
  %v257 = vunpack.c.l.b16 %v82
  %v258 = vunpack.c.l.b16 %v83
  %v259 = vunpack.c.l.b16 %v84
  %v260 = vunpack.c.l.b16 %v85
  %v261 = vunpack.c.l.b16 %v86
  %v262 = vpack.c.b16 %v199, %v198
  %v263 = vpack.c.b16 %v201, %v200
  %v264 = vpack.c.b16 %v203, %v202
  %v265 = vpack.c.b16 %v205, %v204
  %v266 = vpack.c.b16 %v207, %v206
  %v267 = vpack.c.b16 %v209, %v208
  %v268 = vpack.c.b16 %v211, %v210
  %v269 = vpack.c.b16 %v213, %v212
  %v270 = vpack.c.b16 %v215, %v214
  %v271 = vpack.c.b16 %v217, %v216
  %v272 = vpack.c.b16 %v219, %v218
  %v273 = vpack.c.b16 %v221, %v220
  %v274 = vpack.c.b16 %v223, %v222
  %v275 = vpack.c.b16 %v225, %v224
  %v276 = vpack.c.b16 %v227, %v226
  %v277 = vpack.c.b16 %v229, %v228
  %v278 = vpack.c.b16 %v231, %v230
  %v279 = vpack.c.b16 %v233, %v232
  %v280 = vpack.c.b16 %v235, %v234
  %v281 = vpack.c.b16 %v237, %v236
  %v282 = vpack.c.b16 %v239, %v238
  %v283 = vpack.c.b16 %v241, %v240
  %v284 = vpack.c.b16 %v243, %v242
  %v285 = vpack.c.b16 %v245, %v244
  %v286 = vpack.c.b16 %v247, %v246
  %v287 = vpack.c.b16 %v249, %v248
  %v288 = vpack.c.b16 %v251, %v250
  %v289 = vpack.c.b16 %v253, %v252
  %v290 = vpack.c.b16 %v255, %v254
  %v291 = vpack.c.b16 %v257, %v256
  %v292 = vpack.c.b16 %v259, %v258
  %v293 = vpack.c.b16 %v261, %v260
  %326 = vmatprep.subr.bf16.mxu0 0
  %327 = vmatpush1.bf16.msra.mxu0 %v269
  %328 = vmatprep.subr.bf16.mxu0 0
  %329 = vmatpush1.bf16.msra.mxu0 %v268
  %330 = vmatprep.subr.bf16.mxu0 0
  %331 = vmatpush1.bf16.msra.mxu0 %v267
  %332 = vmatprep.subr.bf16.mxu0 0
  %333 = vmatpush1.bf16.msra.mxu0 %v266
  %334 = vmatprep.subr.bf16.mxu0 0
  %335 = vmatpush1.bf16.msra.mxu0 %v265
  %336 = vmatprep.subr.bf16.mxu0 0
  %337 = vmatpush1.bf16.msra.mxu0 %v264
  %338 = vmatprep.subr.bf16.mxu0 0
  %339 = vmatpush1.bf16.msra.mxu0 %v263
  %340 = vmatprep.subr.bf16.mxu0 0
  %341 = vmatpush1.bf16.msra.mxu0 %v262
  %342 = vmatprep.subr.bf16.mxu0 0
  %343 = vmatpush2.bf16.msra.mxu0 %v277
  %344 = vmatprep.subr.bf16.mxu0 0
  %345 = vmatpush2.bf16.msra.mxu0 %v276
  %346 = vmatprep.subr.bf16.mxu0 0
  %347 = vmatpush2.bf16.msra.mxu0 %v275
  %348 = vmatprep.subr.bf16.mxu0 0
  %349 = vmatpush2.bf16.msra.mxu0 %v274
  %350 = vmatprep.subr.bf16.mxu0 0
  %351 = vmatpush2.bf16.msra.mxu0 %v273
  %352 = vmatprep.subr.bf16.mxu0 0
  %353 = vmatpush2.bf16.msra.mxu0 %v272
  %354 = vmatprep.subr.bf16.mxu0 0
  %355 = vmatpush2.bf16.msra.mxu0 %v271
  %356 = vmatprep.subr.bf16.mxu0 0
  %357 = vmatpush2.bf16.msra.mxu0 %v270
  %358 = vmatprep.mubr.bf16.mxu0 %v119
  %359 = vmatmul.mubr.bf16.gmra.mxu0 %v118
  %v360 = vpop.f32.mrf.mxu0
  %v361 = vadd.f32 %v92, %v360
  %v362 = vpop.f32.mrf.mxu0
  %v363 = vpop.f32.mrf.mxu0
  %v364 = vadd.f32 %v92, %v363
  %v365 = vpop.f32.mrf.mxu0
  %366 = vmatprep.mubr.bf16.mxu0 %v123
  %367 = vmatmul.mubr.bf16.gmra.mxu0 %v122
  %v368 = vpop.f32.mrf.mxu0
  %v369 = vadd.f32 %v92, %v368
  %v370 = vpop.f32.mrf.mxu0
  %v371 = vpop.f32.mrf.mxu0
  %v372 = vadd.f32 %v92, %v371
  %v373 = vpop.f32.mrf.mxu0
  %374 = vdwg.mxu0
  %375 = vmatprep.subr.bf16.mxu0 0
  %376 = vmatpush1.bf16.msra.mxu0 %v285
  %377 = vmatprep.subr.bf16.mxu0 0
  %378 = vmatpush1.bf16.msra.mxu0 %v284
  %379 = vmatprep.subr.bf16.mxu0 0
  %380 = vmatpush1.bf16.msra.mxu0 %v283
  %381 = vmatprep.subr.bf16.mxu0 0
  %382 = vmatpush1.bf16.msra.mxu0 %v282
  %383 = vmatprep.subr.bf16.mxu0 0
  %384 = vmatpush1.bf16.msra.mxu0 %v281
  %385 = vmatprep.subr.bf16.mxu0 0
  %386 = vmatpush1.bf16.msra.mxu0 %v280
  %387 = vmatprep.subr.bf16.mxu0 0
  %388 = vmatpush1.bf16.msra.mxu0 %v279
  %389 = vmatprep.subr.bf16.mxu0 0
  %390 = vmatpush1.bf16.msra.mxu0 %v278
  %391 = vmatprep.subr.bf16.mxu0 0
  %392 = vmatpush2.bf16.msra.mxu0 %v293
  %393 = vmatprep.subr.bf16.mxu0 0
  %394 = vmatpush2.bf16.msra.mxu0 %v292
  %395 = vmatprep.subr.bf16.mxu0 0
  %396 = vmatpush2.bf16.msra.mxu0 %v291
  %397 = vmatprep.subr.bf16.mxu0 0
  %398 = vmatpush2.bf16.msra.mxu0 %v290
  %399 = vmatprep.subr.bf16.mxu0 0
  %400 = vmatpush2.bf16.msra.mxu0 %v289
  %401 = vmatprep.subr.bf16.mxu0 0
  %402 = vmatpush2.bf16.msra.mxu0 %v288
  %403 = vmatprep.subr.bf16.mxu0 0
  %404 = vmatpush2.bf16.msra.mxu0 %v287
  %405 = vmatprep.subr.bf16.mxu0 0
  %406 = vmatpush2.bf16.msra.mxu0 %v286
  %407 = vmatprep.mubr.bf16.mxu0 %v121
  %408 = vmatmul.mubr.bf16.gmra.mxu0 %v120
  %v409 = vpop.f32.mrf.mxu0
  %v410 = vadd.f32 %v361, %v409
  %v411 = vpop.f32.mrf.mxu0
  %v412 = vpop.f32.mrf.mxu0
  %v413 = vadd.f32 %v364, %v412
  %v414 = vpop.f32.mrf.mxu0
  %415 = vmatprep.mubr.bf16.mxu0 %v125
  %416 = vmatmul.mubr.bf16.gmra.mxu0 %v124
  %v417 = vpop.f32.mrf.mxu0
  %v418 = vadd.f32 %v369, %v417
  %v419 = vpop.f32.mrf.mxu0
  %v420 = vpop.f32.mrf.mxu0
  %v421 = vadd.f32 %v372, %v420
  %v422 = vpop.f32.mrf.mxu0
  %423 = vdwg.mxu0
  %v424 = vmax.f32 %v410, 0.0
  %v425 = vmax.f32 %v413, 0.0
  %v426 = vmax.f32 %v418, 0.0
  %v427 = vmax.f32 %v421, 0.0
  %v428 = vpack.c.bf16 %v425, %v424
  %v429 = vpack.c.bf16 %v427, %v426
  %v432 = vunpack.c.l.b16 %v428
  %v433 = vunpack.c.h.b16 %v428
  %v434 = vunpack.c.l.b16 %v429
  %v435 = vunpack.c.h.b16 %v429
  %v436 = vpack.c.b16 %v432, %v432
  %v437 = vpack.c.b16 %v433, %v433
  %v438 = vpack.c.b16 %v434, %v434
  %v439 = vpack.c.b16 %v435, %v435
  %444 = vst [vmem:[%s3] sm:$0xf] %v436
  %445 = vst [vmem:[%s3 + $0x4] sm:$0xf] %v437
  %446 = vst [vmem:[%s3 + $0x8] sm:$0xf] %v438
  %447 = vst [vmem:[%s3 + $0xc] sm:$0xf] %v439
  // Predicated region
  $region14: #{random_encoder_forward.5} parent=0 // pred_check
    _
  $region15: #{random_encoder_forward.5} parent=0 // pred_check_branch
    %449 = sbr.rel (0) target = $region17
  $region16: #{random_encoder_forward.5} parent=0 // pred_region
    _
  $region17: #{random_encoder_forward.5} parent=0 // pred_fallthru
    _
  // Predicated region
  $region18: #{random_encoder_forward.5} parent=0 // pred_check
    _
  $region19: #{random_encoder_forward.5} parent=0 // pred_check_branch
    %451 = sbr.rel (0) target = $region21
  $region20: #{random_encoder_forward.5} parent=0 // pred_region
    _
  $region21: #{random_encoder_forward.5} parent=0 // pred_fallthru
    _

// kernel: random_encoder_forward.6
$region0: #{random_encoder_forward.6}
  #allocation0 [shape = 'u32[]', space=smem, size = 0x4, offset = 0x4, fixed_abs, tag = 'smem constant byte address 0x4 - core index']
  #allocation1 [shape = 'u32[144,128]{1,0:T(1,128)}', space=vmem, size = 0x12000, scoped, tag = 'internal scratch']
  %s0 = inlined_call_operand.vmem [shape: bf16[16,576], index: 0, kind: input, shape index: {}]
  %s1 = inlined_call_operand.vmem [shape: bf16[576,128], index: 1, kind: input, shape index: {}]
  %s2 = inlined_call_operand.vmem [shape: f32[1,128], index: 2, kind: input, shape index: {}]
  %s3 = inlined_call_operand.vmem [shape: bf16[16,128], index: 3, kind: output, shape index: {}]
  %s4 = sld [smem:[#allocation0]]
  $region22: #{random_encoder_forward.6} parent=0
    _
  %s6 = ssub.s32 1, %s4
  %s7 = scalar_select 0, %s6, %s4
  // Predicated region
  $region2: #{random_encoder_forward.6} parent=0 // pred_check
    _
  $region3: #{random_encoder_forward.6} parent=0 // pred_check_branch
    %9 = sbr.rel (0) target = $region5
  $region4: #{random_encoder_forward.6} parent=0 // pred_region
    _
  $region5: #{random_encoder_forward.6} parent=0 // pred_fallthru
    _
  // Predicated region
  $region6: #{random_encoder_forward.6} parent=0 // pred_check
    _
  $region7: #{random_encoder_forward.6} parent=0 // pred_check_branch
    %11 = sbr.rel (0) target = $region9
  $region8: #{random_encoder_forward.6} parent=0 // pred_region
    _
  $region9: #{random_encoder_forward.6} parent=0 // pred_fallthru
    _
  // Predicated region
  $region10: #{random_encoder_forward.6} parent=0 // pred_check
    _
  $region11: #{random_encoder_forward.6} parent=0 // pred_check_branch
    %13 = sbr.rel (0) target = $region13
  $region12: #{random_encoder_forward.6} parent=0 // pred_region
    _
  $region13: #{random_encoder_forward.6} parent=0 // pred_fallthru
    _
  %v15 = vld [vmem:[%s0] sm:$0xff]
  %v16 = vld [vmem:[%s0 + $0x8] sm:$0xff]
  %v17 = vld [vmem:[%s0 + $0x10] sm:$0xf]
  %v18 = vld [vmem:[%s0 + $0x14] sm:$0xff]
  %v19 = vld [vmem:[%s0 + $0x1c] sm:$0xff]
  %v20 = vld [vmem:[%s0 + $0x24] sm:$0xf]
  %v21 = vld [vmem:[%s1] sm:$0xf]
  %v22 = vld [vmem:[%s1 + $0x4] sm:$0xf]
  %v23 = vld [vmem:[%s1 + $0x8] sm:$0xf]
  %v24 = vld [vmem:[%s1 + $0xc] sm:$0xf]
  %v25 = vld [vmem:[%s1 + $0x10] sm:$0xf]
  %v26 = vld [vmem:[%s1 + $0x14] sm:$0xf]
  %v27 = vld [vmem:[%s1 + $0x18] sm:$0xf]
  %v28 = vld [vmem:[%s1 + $0x1c] sm:$0xf]
  %v29 = vld [vmem:[%s1 + $0x20] sm:$0xf]
  %v30 = vld [vmem:[%s1 + $0x24] sm:$0xf]
  %v31 = vld [vmem:[%s1 + $0x28] sm:$0xf]
  %v32 = vld [vmem:[%s1 + $0x2c] sm:$0xf]
  %v33 = vld [vmem:[%s1 + $0x30] sm:$0xf]
  %v34 = vld [vmem:[%s1 + $0x34] sm:$0xf]
  %v35 = vld [vmem:[%s1 + $0x38] sm:$0xf]
  %v36 = vld [vmem:[%s1 + $0x3c] sm:$0xf]
  %v37 = vld [vmem:[%s1 + $0x40] sm:$0xf]
  %v38 = vld [vmem:[%s1 + $0x44] sm:$0xf]
  %v39 = vld [vmem:[%s1 + $0x48] sm:$0xf]
  %v40 = vld [vmem:[%s1 + $0x4c] sm:$0xf]
  %v41 = vld [vmem:[%s1 + $0x50] sm:$0xf]
  %v42 = vld [vmem:[%s1 + $0x54] sm:$0xf]
  %v43 = vld [vmem:[%s1 + $0x58] sm:$0xf]
  %v44 = vld [vmem:[%s1 + $0x5c] sm:$0xf]
  %v45 = vld [vmem:[%s1 + $0x60] sm:$0xf]
  %v46 = vld [vmem:[%s1 + $0x64] sm:$0xf]
  %v47 = vld [vmem:[%s1 + $0x68] sm:$0xf]
  %v48 = vld [vmem:[%s1 + $0x6c] sm:$0xf]
  %v49 = vld [vmem:[%s1 + $0x70] sm:$0xf]
  %v50 = vld [vmem:[%s1 + $0x74] sm:$0xf]
  %v51 = vld [vmem:[%s1 + $0x78] sm:$0xf]
  %v52 = vld [vmem:[%s1 + $0x7c] sm:$0xf]
  %v53 = vld [vmem:[%s1 + $0x80] sm:$0xf]
  %v54 = vld [vmem:[%s1 + $0x84] sm:$0xf]
  %v55 = vld [vmem:[%s1 + $0x88] sm:$0xf]
  %v56 = vld [vmem:[%s1 + $0x8c] sm:$0xf]
  %v57 = vld [vmem:[%s1 + $0x90] sm:$0xf]
  %v58 = vld [vmem:[%s1 + $0x94] sm:$0xf]
  %v59 = vld [vmem:[%s1 + $0x98] sm:$0xf]
  %v60 = vld [vmem:[%s1 + $0x9c] sm:$0xf]
  %v61 = vld [vmem:[%s1 + $0xa0] sm:$0xf]
  %v62 = vld [vmem:[%s1 + $0xa4] sm:$0xf]
  %v63 = vld [vmem:[%s1 + $0xa8] sm:$0xf]
  %v64 = vld [vmem:[%s1 + $0xac] sm:$0xf]
  %v65 = vld [vmem:[%s1 + $0xb0] sm:$0xf]
  %v66 = vld [vmem:[%s1 + $0xb4] sm:$0xf]
  %v67 = vld [vmem:[%s1 + $0xb8] sm:$0xf]
  %v68 = vld [vmem:[%s1 + $0xbc] sm:$0xf]
  %v69 = vld [vmem:[%s1 + $0xc0] sm:$0xf]
  %v70 = vld [vmem:[%s1 + $0xc4] sm:$0xf]
  %v71 = vld [vmem:[%s1 + $0xc8] sm:$0xf]
  %v72 = vld [vmem:[%s1 + $0xcc] sm:$0xf]
  %v73 = vld [vmem:[%s1 + $0xd0] sm:$0xf]
  %v74 = vld [vmem:[%s1 + $0xd4] sm:$0xf]
  %v75 = vld [vmem:[%s1 + $0xd8] sm:$0xf]
  %v76 = vld [vmem:[%s1 + $0xdc] sm:$0xf]
  %v77 = vld [vmem:[%s1 + $0xe0] sm:$0xf]
  %v78 = vld [vmem:[%s1 + $0xe4] sm:$0xf]
  %v79 = vld [vmem:[%s1 + $0xe8] sm:$0xf]
  %v80 = vld [vmem:[%s1 + $0xec] sm:$0xf]
  %v81 = vld [vmem:[%s1 + $0xf0] sm:$0xf]
  %v82 = vld [vmem:[%s1 + $0xf4] sm:$0xf]
  %v83 = vld [vmem:[%s1 + $0xf8] sm:$0xf]
  %v84 = vld [vmem:[%s1 + $0xfc] sm:$0xf]
  %v85 = vld [vmem:[%s1 + $0x100] sm:$0xf]
  %v86 = vld [vmem:[%s1 + $0x104] sm:$0xf]
  %v87 = vld [vmem:[%s1 + $0x108] sm:$0xf]
  %v88 = vld [vmem:[%s1 + $0x10c] sm:$0xf]
  %v89 = vld [vmem:[%s1 + $0x110] sm:$0xf]
  %v90 = vld [vmem:[%s1 + $0x114] sm:$0xf]
  %v91 = vld [vmem:[%s1 + $0x118] sm:$0xf]
  %v92 = vld [vmem:[%s1 + $0x11c] sm:$0xf]
  %v93 = vld [vmem:[%s2] sm:$0x1]
  %v95 = vlaneseq
  %v96 = vshrl.u32 %v95, 7
  %v97 = vsub.s32 0, %v96
  %v98 = vrot.slane %v93, %v97
  %v106 = vunpack.c.l.b16 %v15
  %v107 = vunpack.c.h.b16 %v15
  %v108 = vunpack.c.l.b16 %v16
  %v109 = vunpack.c.h.b16 %v16
  %v110 = vunpack.c.l.b16 %v17
  %v111 = vunpack.c.l.b16 %v18
  %v112 = vunpack.c.h.b16 %v18
  %v113 = vunpack.c.l.b16 %v19
  %v114 = vunpack.c.h.b16 %v19
  %v115 = vunpack.c.l.b16 %v20
  %v116 = vpack.c.b16 %v111, %v106
  %v117 = vpack.c.b16 %v112, %v107
  %v118 = vpack.c.b16 %v113, %v108
  %v119 = vpack.c.b16 %v114, %v109
  %v120 = vpack.c.b16 %v115, %v110
  %v197 = vunpack.c.l.b16 %v21
  %v198 = vunpack.c.l.b16 %v22
  %v199 = vunpack.c.l.b16 %v23
  %v200 = vunpack.c.l.b16 %v24
  %v201 = vunpack.c.l.b16 %v25
  %v202 = vunpack.c.l.b16 %v26
  %v203 = vunpack.c.l.b16 %v27
  %v204 = vunpack.c.l.b16 %v28
  %v205 = vunpack.c.l.b16 %v29
  %v206 = vunpack.c.l.b16 %v30
  %v207 = vunpack.c.l.b16 %v31
  %v208 = vunpack.c.l.b16 %v32
  %v209 = vunpack.c.l.b16 %v33
  %v210 = vunpack.c.l.b16 %v34
  %v211 = vunpack.c.l.b16 %v35
  %v212 = vunpack.c.l.b16 %v36
  %v213 = vunpack.c.l.b16 %v37
  %v214 = vunpack.c.l.b16 %v38
  %v215 = vunpack.c.l.b16 %v39
  %v216 = vunpack.c.l.b16 %v40
  %v217 = vunpack.c.l.b16 %v41
  %v218 = vunpack.c.l.b16 %v42
  %v219 = vunpack.c.l.b16 %v43
  %v220 = vunpack.c.l.b16 %v44
  %v221 = vunpack.c.l.b16 %v45
  %v222 = vunpack.c.l.b16 %v46
  %v223 = vunpack.c.l.b16 %v47
  %v224 = vunpack.c.l.b16 %v48
  %v225 = vunpack.c.l.b16 %v49
  %v226 = vunpack.c.l.b16 %v50
  %v227 = vunpack.c.l.b16 %v51
  %v228 = vunpack.c.l.b16 %v52
  %v229 = vunpack.c.l.b16 %v53
  %v230 = vunpack.c.l.b16 %v54
  %v231 = vunpack.c.l.b16 %v55
  %v232 = vunpack.c.l.b16 %v56
  %v233 = vunpack.c.l.b16 %v57
  %v234 = vunpack.c.l.b16 %v58
  %v235 = vunpack.c.l.b16 %v59
  %v236 = vunpack.c.l.b16 %v60
  %v237 = vunpack.c.l.b16 %v61
  %v238 = vunpack.c.l.b16 %v62
  %v239 = vunpack.c.l.b16 %v63
  %v240 = vunpack.c.l.b16 %v64
  %v241 = vunpack.c.l.b16 %v65
  %v242 = vunpack.c.l.b16 %v66
  %v243 = vunpack.c.l.b16 %v67
  %v244 = vunpack.c.l.b16 %v68
  %v245 = vunpack.c.l.b16 %v69
  %v246 = vunpack.c.l.b16 %v70
  %v247 = vunpack.c.l.b16 %v71
  %v248 = vunpack.c.l.b16 %v72
  %v249 = vunpack.c.l.b16 %v73
  %v250 = vunpack.c.l.b16 %v74
  %v251 = vunpack.c.l.b16 %v75
  %v252 = vunpack.c.l.b16 %v76
  %v253 = vunpack.c.l.b16 %v77
  %v254 = vunpack.c.l.b16 %v78
  %v255 = vunpack.c.l.b16 %v79
  %v256 = vunpack.c.l.b16 %v80
  %v257 = vunpack.c.l.b16 %v81
  %v258 = vunpack.c.l.b16 %v82
  %v259 = vunpack.c.l.b16 %v83
  %v260 = vunpack.c.l.b16 %v84
  %v261 = vunpack.c.l.b16 %v85
  %v262 = vunpack.c.l.b16 %v86
  %v263 = vunpack.c.l.b16 %v87
  %v264 = vunpack.c.l.b16 %v88
  %v265 = vunpack.c.l.b16 %v89
  %v266 = vunpack.c.l.b16 %v90
  %v267 = vunpack.c.l.b16 %v91
  %v268 = vunpack.c.l.b16 %v92
  %v269 = vpack.c.b16 %v198, %v197
  %v270 = vpack.c.b16 %v200, %v199
  %v271 = vpack.c.b16 %v202, %v201
  %v272 = vpack.c.b16 %v204, %v203
  %v273 = vpack.c.b16 %v206, %v205
  %v274 = vpack.c.b16 %v208, %v207
  %v275 = vpack.c.b16 %v210, %v209
  %v276 = vpack.c.b16 %v212, %v211
  %v277 = vpack.c.b16 %v214, %v213
  %v278 = vpack.c.b16 %v216, %v215
  %v279 = vpack.c.b16 %v218, %v217
  %v280 = vpack.c.b16 %v220, %v219
  %v281 = vpack.c.b16 %v222, %v221
  %v282 = vpack.c.b16 %v224, %v223
  %v283 = vpack.c.b16 %v226, %v225
  %v284 = vpack.c.b16 %v228, %v227
  %v285 = vpack.c.b16 %v230, %v229
  %v286 = vpack.c.b16 %v232, %v231
  %v287 = vpack.c.b16 %v234, %v233
  %v288 = vpack.c.b16 %v236, %v235
  %v289 = vpack.c.b16 %v238, %v237
  %v290 = vpack.c.b16 %v240, %v239
  %v291 = vpack.c.b16 %v242, %v241
  %v292 = vpack.c.b16 %v244, %v243
  %v293 = vpack.c.b16 %v246, %v245
  %v294 = vpack.c.b16 %v248, %v247
  %v295 = vpack.c.b16 %v250, %v249
  %v296 = vpack.c.b16 %v252, %v251
  %v297 = vpack.c.b16 %v254, %v253
  %v298 = vpack.c.b16 %v256, %v255
  %v299 = vpack.c.b16 %v258, %v257
  %v300 = vpack.c.b16 %v260, %v259
  %v301 = vpack.c.b16 %v262, %v261
  %v302 = vpack.c.b16 %v264, %v263
  %v303 = vpack.c.b16 %v266, %v265
  %v304 = vpack.c.b16 %v268, %v267
  %vm341 = vcmask 523264
  %v343 = vsel %vm341, %v120, 0
  %345 = vmatprep.subr.bf16.mxu0 0
  %346 = vmatpush1.bf16.msra.mxu0 %v276
  %347 = vmatprep.subr.bf16.mxu0 0
  %348 = vmatpush1.bf16.msra.mxu0 %v275
  %349 = vmatprep.subr.bf16.mxu0 0
  %350 = vmatpush1.bf16.msra.mxu0 %v274
  %351 = vmatprep.subr.bf16.mxu0 0
  %352 = vmatpush1.bf16.msra.mxu0 %v273
  %353 = vmatprep.subr.bf16.mxu0 0
  %354 = vmatpush1.bf16.msra.mxu0 %v272
  %355 = vmatprep.subr.bf16.mxu0 0
  %356 = vmatpush1.bf16.msra.mxu0 %v271
  %357 = vmatprep.subr.bf16.mxu0 0
  %358 = vmatpush1.bf16.msra.mxu0 %v270
  %359 = vmatprep.subr.bf16.mxu0 0
  %360 = vmatpush1.bf16.msra.mxu0 %v269
  %361 = vmatprep.subr.bf16.mxu0 0
  %362 = vmatpush2.bf16.msra.mxu0 %v284
  %363 = vmatprep.subr.bf16.mxu0 0
  %364 = vmatpush2.bf16.msra.mxu0 %v283
  %365 = vmatprep.subr.bf16.mxu0 0
  %366 = vmatpush2.bf16.msra.mxu0 %v282
  %367 = vmatprep.subr.bf16.mxu0 0
  %368 = vmatpush2.bf16.msra.mxu0 %v281
  %369 = vmatprep.subr.bf16.mxu0 0
  %370 = vmatpush2.bf16.msra.mxu0 %v280
  %371 = vmatprep.subr.bf16.mxu0 0
  %372 = vmatpush2.bf16.msra.mxu0 %v279
  %373 = vmatprep.subr.bf16.mxu0 0
  %374 = vmatpush2.bf16.msra.mxu0 %v278
  %375 = vmatprep.subr.bf16.mxu0 0
  %376 = vmatpush2.bf16.msra.mxu0 %v277
  %377 = vmatprep.mubr.bf16.mxu0 %v117
  %378 = vmatmul.mubr.bf16.gmra.mxu0 %v116
  %v379 = vpop.f32.mrf.mxu0
  %v380 = vadd.f32 %v98, %v379
  %v381 = vpop.f32.mrf.mxu0
  %v382 = vpop.f32.mrf.mxu0
  %v383 = vadd.f32 %v98, %v382
  %v384 = vpop.f32.mrf.mxu0
  %385 = vdwg.mxu0
  %386 = vmatprep.subr.bf16.mxu0 0
  %387 = vmatpush1.bf16.msra.mxu0 %v292
  %388 = vmatprep.subr.bf16.mxu0 0
  %389 = vmatpush1.bf16.msra.mxu0 %v291
  %390 = vmatprep.subr.bf16.mxu0 0
  %391 = vmatpush1.bf16.msra.mxu0 %v290
  %392 = vmatprep.subr.bf16.mxu0 0
  %393 = vmatpush1.bf16.msra.mxu0 %v289
  %394 = vmatprep.subr.bf16.mxu0 0
  %395 = vmatpush1.bf16.msra.mxu0 %v288
  %396 = vmatprep.subr.bf16.mxu0 0
  %397 = vmatpush1.bf16.msra.mxu0 %v287
  %398 = vmatprep.subr.bf16.mxu0 0
  %399 = vmatpush1.bf16.msra.mxu0 %v286
  %400 = vmatprep.subr.bf16.mxu0 0
  %401 = vmatpush1.bf16.msra.mxu0 %v285
  %402 = vmatprep.subr.bf16.mxu0 0
  %403 = vmatpush2.bf16.msra.mxu0 %v300
  %404 = vmatprep.subr.bf16.mxu0 0
  %405 = vmatpush2.bf16.msra.mxu0 %v299
  %406 = vmatprep.subr.bf16.mxu0 0
  %407 = vmatpush2.bf16.msra.mxu0 %v298
  %408 = vmatprep.subr.bf16.mxu0 0
  %409 = vmatpush2.bf16.msra.mxu0 %v297
  %410 = vmatprep.subr.bf16.mxu0 0
  %411 = vmatpush2.bf16.msra.mxu0 %v296
  %412 = vmatprep.subr.bf16.mxu0 0
  %413 = vmatpush2.bf16.msra.mxu0 %v295
  %414 = vmatprep.subr.bf16.mxu0 0
  %415 = vmatpush2.bf16.msra.mxu0 %v294
  %416 = vmatprep.subr.bf16.mxu0 0
  %417 = vmatpush2.bf16.msra.mxu0 %v293
  %418 = vmatprep.mubr.bf16.mxu0 %v119
  %419 = vmatmul.mubr.bf16.gmra.mxu0 %v118
  %v420 = vpop.f32.mrf.mxu0
  %v421 = vadd.f32 %v380, %v420
  %v422 = vpop.f32.mrf.mxu0
  %v423 = vpop.f32.mrf.mxu0
  %v424 = vadd.f32 %v383, %v423
  %v425 = vpop.f32.mrf.mxu0
  %426 = vdwg.mxu0
  %427 = vmatprep.subr.bf16.mxu0 0
  %428 = vmatpush1.bf16.msra.mxu0 0
  %429 = vmatprep.subr.bf16.mxu0 0
  %430 = vmatpush1.bf16.msra.mxu0 0
  %431 = vmatprep.subr.bf16.mxu0 0
  %432 = vmatpush1.bf16.msra.mxu0 0
  %433 = vmatprep.subr.bf16.mxu0 0
  %434 = vmatpush1.bf16.msra.mxu0 0
  %435 = vmatprep.subr.bf16.mxu0 0
  %436 = vmatpush1.bf16.msra.mxu0 %v304
  %437 = vmatprep.subr.bf16.mxu0 0
  %438 = vmatpush1.bf16.msra.mxu0 %v303
  %439 = vmatprep.subr.bf16.mxu0 0
  %440 = vmatpush1.bf16.msra.mxu0 %v302
  %441 = vmatprep.subr.bf16.mxu0 0
  %442 = vmatpush1.bf16.msra.mxu0 %v301
  %443 = vmatprep.subr.bf16.mxu0 0
  %444 = vmatpush2.bf16.msra.mxu0 0
  %445 = vmatprep.subr.bf16.mxu0 0
  %446 = vmatpush2.bf16.msra.mxu0 0
  %447 = vmatprep.subr.bf16.mxu0 0
  %448 = vmatpush2.bf16.msra.mxu0 0
  %449 = vmatprep.subr.bf16.mxu0 0
  %450 = vmatpush2.bf16.msra.mxu0 0
  %451 = vmatprep.subr.bf16.mxu0 0
  %452 = vmatpush2.bf16.msra.mxu0 0
  %453 = vmatprep.subr.bf16.mxu0 0
  %454 = vmatpush2.bf16.msra.mxu0 0
  %455 = vmatprep.subr.bf16.mxu0 0
  %456 = vmatpush2.bf16.msra.mxu0 0
  %457 = vmatprep.subr.bf16.mxu0 0
  %458 = vmatpush2.bf16.msra.mxu0 0
  %459 = vmatprep.mubr.bf16.mxu0 0
  %460 = vmatmul.mubr.bf16.gmra.mxu0 %v343
  %v461 = vpop.f32.mrf.mxu0
  %v462 = vadd.f32 %v421, %v461
  %v463 = vpop.f32.mrf.mxu0
  %v464 = vpop.f32.mrf.mxu0
  %v465 = vadd.f32 %v424, %v464
  %v466 = vpop.f32.mrf.mxu0
  %467 = vdwg.mxu0
  %v468 = vmax.f32 %v462, 0.0
  %v469 = vmax.f32 %v465, 0.0
  %v470 = vpack.c.bf16 %v469, %v468
  %v472 = vunpack.c.l.b16 %v470
  %v473 = vunpack.c.h.b16 %v470
  %v474 = vpack.c.b16 %v472, %v472
  %v475 = vpack.c.b16 %v473, %v473
  %478 = vst [vmem:[%s3] sm:$0xf] %v474
  %479 = vst [vmem:[%s3 + $0x4] sm:$0xf] %v475
  // Predicated region
  $region14: #{random_encoder_forward.6} parent=0 // pred_check
    _
  $region15: #{random_encoder_forward.6} parent=0 // pred_check_branch
    %481 = sbr.rel (0) target = $region17
  $region16: #{random_encoder_forward.6} parent=0 // pred_region
    _
  $region17: #{random_encoder_forward.6} parent=0 // pred_fallthru
    _
  // Predicated region
  $region18: #{random_encoder_forward.6} parent=0 // pred_check
    _
  $region19: #{random_encoder_forward.6} parent=0 // pred_check_branch
    %483 = sbr.rel (0) target = $region21
  $region20: #{random_encoder_forward.6} parent=0 // pred_region
    _
  $region21: #{random_encoder_forward.6} parent=0 // pred_fallthru
    _

// kernel: random_encoder_forward.7
$region0: #{random_encoder_forward.7}
  #allocation0 [shape = 'u32[]', space=smem, size = 0x4, offset = 0x4, fixed_abs, tag = 'smem constant byte address 0x4 - core index']
  #allocation1 [shape = 'u32[144,128]{1,0:T(1,128)}', space=vmem, size = 0x12000, scoped, tag = 'internal scratch']
  %s0 = inlined_call_operand.vmem [shape: bf16[16,64], index: 0, kind: input, shape index: {}]
  %s1 = inlined_call_operand.vmem [shape: bf16[64,128], index: 1, kind: input, shape index: {}]
  %s2 = inlined_call_operand.vmem [shape: f32[1,128], index: 2, kind: input, shape index: {}]
  %s3 = inlined_call_operand.vmem [shape: f32[1,128], index: 3, kind: input, shape index: {}]
  %s4 = inlined_call_operand.vmem [shape: f32[1,128], index: 4, kind: input, shape index: {}]
  %s5 = inlined_call_operand.vmem [shape: f32[16,128], index: 5, kind: output, shape index: {}]
  %s6 = sld [smem:[#allocation0]]
  $region30: #{random_encoder_forward.7} parent=0
    _
  %s8 = ssub.s32 1, %s6
  %s9 = scalar_select 0, %s8, %s6
  // Predicated region
  $region2: #{random_encoder_forward.7} parent=0 // pred_check
    _
  $region3: #{random_encoder_forward.7} parent=0 // pred_check_branch
    %11 = sbr.rel (0) target = $region5
  $region4: #{random_encoder_forward.7} parent=0 // pred_region
    _
  $region5: #{random_encoder_forward.7} parent=0 // pred_fallthru
    _
  // Predicated region
  $region6: #{random_encoder_forward.7} parent=0 // pred_check
    _
  $region7: #{random_encoder_forward.7} parent=0 // pred_check_branch
    %13 = sbr.rel (0) target = $region9
  $region8: #{random_encoder_forward.7} parent=0 // pred_region
    _
  $region9: #{random_encoder_forward.7} parent=0 // pred_fallthru
    _
  // Predicated region
  $region10: #{random_encoder_forward.7} parent=0 // pred_check
    _
  $region11: #{random_encoder_forward.7} parent=0 // pred_check_branch
    %15 = sbr.rel (0) target = $region13
  $region12: #{random_encoder_forward.7} parent=0 // pred_region
    _
  $region13: #{random_encoder_forward.7} parent=0 // pred_fallthru
    _
  // Predicated region
  $region14: #{random_encoder_forward.7} parent=0 // pred_check
    _
  $region15: #{random_encoder_forward.7} parent=0 // pred_check_branch
    %17 = sbr.rel (0) target = $region17
  $region16: #{random_encoder_forward.7} parent=0 // pred_region
    _
  $region17: #{random_encoder_forward.7} parent=0 // pred_fallthru
    _
  // Predicated region
  $region18: #{random_encoder_forward.7} parent=0 // pred_check
    _
  $region19: #{random_encoder_forward.7} parent=0 // pred_check_branch
    %19 = sbr.rel (0) target = $region21
  $region20: #{random_encoder_forward.7} parent=0 // pred_region
    _
  $region21: #{random_encoder_forward.7} parent=0 // pred_fallthru
    _
  %v21 = vld [vmem:[%s0] sm:$0xf]
  %v22 = vld [vmem:[%s0 + $0x4] sm:$0xf]
  %v23 = vld [vmem:[%s1] sm:$0xf]
  %v24 = vld [vmem:[%s1 + $0x4] sm:$0xf]
  %v25 = vld [vmem:[%s1 + $0x8] sm:$0xf]
  %v26 = vld [vmem:[%s1 + $0xc] sm:$0xf]
  %v27 = vld [vmem:[%s1 + $0x10] sm:$0xf]
  %v28 = vld [vmem:[%s1 + $0x14] sm:$0xf]
  %v29 = vld [vmem:[%s1 + $0x18] sm:$0xf]
  %v30 = vld [vmem:[%s1 + $0x1c] sm:$0xf]
  %v31 = vld [vmem:[%s2] sm:$0x1]
  %v33 = vlaneseq
  %v34 = vshrl.u32 %v33, 7
  %v35 = vsub.s32 0, %v34
  %v36 = vrot.slane %v31, %v35
  %v40 = vunpack.c.l.b16 %v21
  %v41 = vunpack.c.l.b16 %v22
  %v42 = vpack.c.b16 %v41, %v40
  %v51 = vunpack.c.l.b16 %v23
  %v52 = vunpack.c.l.b16 %v24
  %v53 = vunpack.c.l.b16 %v25
  %v54 = vunpack.c.l.b16 %v26
  %v55 = vunpack.c.l.b16 %v27
  %v56 = vunpack.c.l.b16 %v28
  %v57 = vunpack.c.l.b16 %v29
  %v58 = vunpack.c.l.b16 %v30
  %v59 = vpack.c.b16 %v52, %v51
  %v60 = vpack.c.b16 %v54, %v53
  %v61 = vpack.c.b16 %v56, %v55
  %v62 = vpack.c.b16 %v58, %v57
  %vm67 = vcmask 523264
  %v69 = vsel %vm67, %v42, 0
  %71 = vmatprep.subr.bf16.mxu0 0
  %72 = vmatpush1.bf16.msra.mxu0 0
  %73 = vmatprep.subr.bf16.mxu0 0
  %74 = vmatpush1.bf16.msra.mxu0 0
  %75 = vmatprep.subr.bf16.mxu0 0
  %76 = vmatpush1.bf16.msra.mxu0 0
  %77 = vmatprep.subr.bf16.mxu0 0
  %78 = vmatpush1.bf16.msra.mxu0 0
  %79 = vmatprep.subr.bf16.mxu0 0
  %80 = vmatpush1.bf16.msra.mxu0 %v62
  %81 = vmatprep.subr.bf16.mxu0 0
  %82 = vmatpush1.bf16.msra.mxu0 %v61
  %83 = vmatprep.subr.bf16.mxu0 0
  %84 = vmatpush1.bf16.msra.mxu0 %v60
  %85 = vmatprep.subr.bf16.mxu0 0
  %86 = vmatpush1.bf16.msra.mxu0 %v59
  %87 = vmatprep.subr.bf16.mxu0 0
  %88 = vmatpush2.bf16.msra.mxu0 0
  %89 = vmatprep.subr.bf16.mxu0 0
  %90 = vmatpush2.bf16.msra.mxu0 0
  %91 = vmatprep.subr.bf16.mxu0 0
  %92 = vmatpush2.bf16.msra.mxu0 0
  %93 = vmatprep.subr.bf16.mxu0 0
  %94 = vmatpush2.bf16.msra.mxu0 0
  %95 = vmatprep.subr.bf16.mxu0 0
  %96 = vmatpush2.bf16.msra.mxu0 0
  %97 = vmatprep.subr.bf16.mxu0 0
  %98 = vmatpush2.bf16.msra.mxu0 0
  %99 = vmatprep.subr.bf16.mxu0 0
  %100 = vmatpush2.bf16.msra.mxu0 0
  %101 = vmatprep.subr.bf16.mxu0 0
  %102 = vmatpush2.bf16.msra.mxu0 0
  %103 = vmatprep.mubr.bf16.mxu0 0
  %104 = vmatmul.mubr.bf16.gmra.mxu0 %v69
  %v105 = vpop.f32.mrf.mxu0
  %v106 = vadd.f32 %v36, %v105
  %v107 = vpop.f32.mrf.mxu0
  %v108 = vpop.f32.mrf.mxu0
  %v109 = vadd.f32 %v36, %v108
  %v110 = vpop.f32.mrf.mxu0
  %111 = vdwg.mxu0
  %v112 = vlaneseq
  %v113 = vand.u32 %v112, 127
  %vm114 = vcmp.lt.s32.totalorder %v113, 32
  %v115 = vsel %vm114, 1, 0
  %v116 = vcvt.s32.f32 %v115
  %v117 = vmul.f32 %v106, %v116
  %v118 = vmul.f32 %v109, %v116
  %119 = vadd.xlane.f32.xlu0 %v117
  %v120 = vpop.xlane.xlu0 %119
  %121 = vadd.xlane.f32.xlu0 %v118
  %v122 = vpop.xlane.xlu0 %121
  %v123 = vmul.f32 %v120, 0.03125
  %v124 = vmul.f32 %v122, 0.03125
  %v125 = vsub.f32 %v106, %v123
  %v126 = vsub.f32 %v109, %v124
  %v127 = vmul.f32 %v125, %v116
  %v128 = vmul.f32 %v126, %v116
  %v129 = vmul.f32 %v127, %v127
  %v130 = vmul.f32 %v128, %v128
  %131 = vadd.xlane.f32.xlu0 %v129
  %v132 = vpop.xlane.xlu0 %131
  %133 = vadd.xlane.f32.xlu0 %v130
  %v134 = vpop.xlane.xlu0 %133
  %v135 = vmul.f32 %v132, 0.03125
  %v136 = vmul.f32 %v134, 0.03125
  %v137 = vadd.f32 %v135, 1e-05
  %v138 = vadd.f32 %v136, 1e-05
  %v139 = vrsqrt.pop %v137
  %v140 = vrsqrt.pop %v138
  %v141 = vmul.f32 %v127, %v139
  %v142 = vmul.f32 %v128, %v140
  %v143 = vld [vmem:[%s3] sm:$0x1]
  %v145 = vlaneseq
  %v146 = vshrl.u32 %v145, 7
  %v147 = vsub.s32 0, %v146
  %v148 = vrot.slane %v143, %v147
  %v150 = vmul.f32 %v141, %v148
  %v151 = vmul.f32 %v142, %v148
  %v152 = vld [vmem:[%s4] sm:$0x1]
  %v154 = vlaneseq
  %v155 = vshrl.u32 %v154, 7
  %v156 = vsub.s32 0, %v155
  %v157 = vrot.slane %v152, %v156
  %v159 = vadd.f32 %v150, %v157
  %v160 = vadd.f32 %v151, %v157
  %161 = vst [vmem:[%s5] sm:$0xff] %v159
  %162 = vst [vmem:[%s5 + $0x8] sm:$0xff] %v160
  // Predicated region
  $region22: #{random_encoder_forward.7} parent=0 // pred_check
    _
  $region23: #{random_encoder_forward.7} parent=0 // pred_check_branch
    %164 = sbr.rel (0) target = $region25
  $region24: #{random_encoder_forward.7} parent=0 // pred_region
    _
  $region25: #{random_encoder_forward.7} parent=0 // pred_fallthru
    _
  // Predicated region
  $region26: #{random_encoder_forward.7} parent=0 // pred_check
    _
  $region27: #{random_encoder_forward.7} parent=0 // pred_check_branch
    %166 = sbr.rel (0) target = $region29
  $region28: #{random_encoder_forward.7} parent=0 // pred_region
    _
  $region29: #{random_encoder_forward.7} parent=0 // pred_fallthru
    _

</llo_original>
